<compile_context>
chip_gen: v7x
topology: tpu7x:2x2x1
jax: 0.10.0
libtpu: 0.0.40
codegen_flags: <defaults>
</compile_context>

<pallas_src>
import math

import jax
import jax.numpy as jnp
from jax.experimental import pallas as pl
from jax.experimental.pallas import tpu as pltpu

N_EMBD = 32          # config.n_embd
N_HEAD = 4           # config.n_head
HD = N_EMBD // N_HEAD
DOWN = 32            # Adapter.down_dim
NEG = -1000000000.0  # exact constant used by masked_fill in the reference
LN_EPS = 1e-12

# ---- packed weight-slab column offsets (all sub-matrices have 32 rows) -----
QKV_W = 128                        # fused QKV weight, zero-padded 96 -> 128 lanes
WI_OFF = QKV_W                     # 128  (C, 4C)
WP_OFF = WI_OFF + 4 * N_EMBD       # 256  (C, C)
A1_OFF = WP_OFF + N_EMBD           # 288  (C, DOWN)
A2_OFF = A1_OFF + DOWN             # 320  (DOWN, C)
C1_OFF = A2_OFF + N_EMBD           # 352  (C, DOWN)
C2_OFF = C1_OFF + DOWN             # 384  (DOWN, C)
W_SLAB_W = C2_OFF + N_EMBD         # 416
W_SLAB_PAD = 512                   # pad lane count to a multiple of 128


# ---------------------------------------------------------------------------
# math helpers (kernel + pure-JAX reference)
# ---------------------------------------------------------------------------
_A1, _A2, _A3, _A4, _A5 = 0.254829592, -0.284496736, 1.421413741, -1.453152027, 1.061405429
_P = 0.3275911


def _erf_poly(x, recip):
    # Abramowitz & Stegun 7.1.26 polynomial (|err| < 1.5e-7), built only from
    # ops that lower cleanly in Mosaic (exp / abs / where / mul / add / recip).
    # TODO(synk): torch F.gelu uses exact erf; this polynomial matches it to
    # ~fp32 precision.
    ax = jnp.abs(x)
    t = recip(1.0 + _P * ax)
    poly = ((((_A5 * t + _A4) * t + _A3) * t + _A2) * t + _A1) * t
    y = 1.0 - poly * jnp.exp(-ax * ax)
    return jnp.where(x >= 0.0, y, -y)


def _gelu_ref(x):
    return 0.5 * x * (1.0 + _erf_poly(x * (1.0 / math.sqrt(2.0)), lambda v: 1.0 / v))


def _gelu_kernel(x):
    # divide moved onto the EUP reciprocal path (exact), freeing VALU slots
    return 0.5 * x * (1.0 + _erf_poly(x * (1.0 / math.sqrt(2.0)),
                                      lambda v: pl.reciprocal(v, approx=False)))


def _layernorm(x, gamma, beta):
    mu = jnp.mean(x, axis=-1, keepdims=True)
    var = jnp.mean((x - mu) ** 2, axis=-1, keepdims=True)
    return (x - mu) * jax.lax.rsqrt(var + LN_EPS) * gamma + beta


def _softmax_ref(att):
    m = jnp.max(att, axis=-1, keepdims=True)
    e = jnp.exp(att - m)
    return e / jnp.sum(e, axis=-1, keepdims=True)


def _softmax_kernel(att):
    m = jnp.max(att, axis=-1, keepdims=True)
    e = jnp.exp(att - m)
    return e * pl.reciprocal(jnp.sum(e, axis=-1, keepdims=True), approx=False)


# ---------------------------------------------------------------------------
# Pallas kernel: one grid step = Bb full sequences, whole Block forward
# ---------------------------------------------------------------------------
def block_kernel(x_ref, bias_ref, w_ref, wo_ref, v_ref, out_ref):
    Bb, T, C = x_ref.shape
    rows = Bb * T
    hd = C // N_HEAD
    scale = 1.0 / math.sqrt(hd)

    x = x_ref[...].reshape(rows, C)                 # (rows, C) row slab

    # ---- packed weights / vectors (static slices are free) -----------------
    W = w_ref[...]                                  # (C, 512)
    V = v_ref[...]                                  # (12, 128)
    wo = wo_ref[...]                                # (4C, C)

    w_qkv = W[:, 0:QKV_W]                           # (C, 128), cols 96:128 are 0
    wi = W[:, WI_OFF:WI_OFF + 4 * C]
    wp = W[:, WP_OFF:WP_OFF + C]
    a1w = W[:, A1_OFF:A1_OFF + DOWN]
    a2w = W[:, A2_OFF:A2_OFF + C]
    c1w = W[:, C1_OFF:C1_OFF + DOWN]
    c2w = W[:, C2_OFF:C2_OFF + C]

    b_qkv = V[0:1, :]                               # (1, 128), pad lanes are 0
    bi = V[1:2, 0:4 * C]
    bp = V[2:3, 0:C]
    a1b = V[3:4, 0:DOWN]
    a2b = V[4:5, 0:C]
    bo = V[5:6, 0:C]
    c1b = V[6:7, 0:DOWN]
    c2b = V[7:8, 0:C]
    g1 = V[8:9, 0:C]
    be1 = V[9:10, 0:C]
    g2 = V[10:11, 0:C]
    be2 = V[11:12, 0:C]

    # ---- SelfAttention.self_att --------------------------------------------
    # fused Q|K|V projection: one (rows, C) @ (C, 128) MXU dispatch, lane-dense
    qkv = jnp.dot(x, w_qkv, preferred_element_type=jnp.float32) + b_qkv

    def gather_heads(off):
        # (rows, 128) -> head-major (N_HEAD*Bb, T, hd); only static lane slices,
        # leading-dim reshapes and a leading-axis concat (no transposes).
        parts = [qkv[:, off + h * hd:off + (h + 1) * hd].reshape(Bb, T, hd)
                 for h in range(N_HEAD)]
        return jnp.concatenate(parts, axis=0)

    q = gather_heads(0)
    k = gather_heads(C)
    v = gather_heads(2 * C)

    # additive key-padding bias (0 / -1e9), replicated per head along batch
    bias = jnp.concatenate([bias_ref[...]] * N_HEAD, axis=0)      # (N_HEAD*Bb, 1, T)

    # one batched QK^T, one masked softmax, one PV  (attn_drop is identity)
    att = jnp.einsum('bqd,bkd->bqk', q, k,
                     preferred_element_type=jnp.float32) * scale  # (N_HEAD*Bb, T, T)
    att = att + bias
    att = _softmax_kernel(att)
    ya = jnp.einsum('bqk,bkd->bqd', att, v,
                    preferred_element_type=jnp.float32)           # (N_HEAD*Bb, T, hd)

    # merge heads back to (rows, C) and do ONE output projection (resid_drop = id)
    y = jnp.concatenate([ya[h * Bb:(h + 1) * Bb].reshape(rows, hd)
                         for h in range(N_HEAD)], axis=-1)        # (rows, C)
    y = jnp.dot(y, wp, preferred_element_type=jnp.float32) + bp

    # ---- attention Adapter + residual + LayerNorm ---------------------------
    ad = _gelu_kernel(jnp.dot(y, a1w, preferred_element_type=jnp.float32) + a1b)
    ad = jnp.dot(ad, a2w, preferred_element_type=jnp.float32) + a2b
    h1 = _layernorm(ad + y + x, g1, be1)

    # ---- feed-forward (intermediate + output; output dropout = identity) ----
    t = _gelu_kernel(jnp.dot(h1, wi, preferred_element_type=jnp.float32) + bi)
    t = jnp.dot(t, wo, preferred_element_type=jnp.float32) + bo

    # ---- block Adapter + residual + LayerNorm -------------------------------
    ad2 = _gelu_kernel(jnp.dot(t, c1w, preferred_element_type=jnp.float32) + c1b)
    ad2 = jnp.dot(ad2, c2w, preferred_element_type=jnp.float32) + c2b
    out = _layernorm(h1 + ad2 + t, g2, be2)

    out_ref[...] = out.reshape(Bb, T, C)


# ---------------------------------------------------------------------------
# wrapper: weight packing + grid selection
# ---------------------------------------------------------------------------
def _pad_lanes(a, width):
    return jnp.pad(a, ((0, 0), (0, width - a.shape[1])))


def _pack_params(p):
    assert DOWN == N_EMBD, "packing assumes adapter down_dim == n_embd"
    C = N_EMBD
    w_qkv = _pad_lanes(jnp.concatenate([p["wq"], p["wk"], p["wv"]], axis=1), QKV_W)
    b_qkv = _pad_lanes(jnp.concatenate([p["bq"], p["bk"], p["bv"]], axis=1), 128)

    w_slab = jnp.concatenate(
        [w_qkv, p["wi"], p["wp"], p["a1w"], p["a2w"], p["c1w"], p["c2w"]], axis=1)
    assert w_slab.shape == (C, W_SLAB_W)
    w_slab = _pad_lanes(w_slab, W_SLAB_PAD)                                 # (C, 512)

    v_rows = [b_qkv, p["bi"], p["bp"], p["a1b"], p["a2b"], p["bo"],
              p["c1b"], p["c2b"], p["g1"], p["be1"], p["g2"], p["be2"]]
    v_slab = jnp.concatenate([_pad_lanes(r, 128) for r in v_rows], axis=0)  # (12, 128)

    return w_slab, p["wo"], v_slab


def _pick_block_b(B, T, row_bytes=4096, vmem_budget=8 << 20, min_rows_per_core=256):
    """Sequences per grid step.

    Prefer one big step (single TensorCore on v5e/v6e; per-step pipeline
    overhead ~0.35us dominates at small sizes).  Split into >=2 'parallel'
    programs (v7x megacore) only when every program still gets
    >= min_rows_per_core rows.  Always keep the activation slab under a VMEM
    budget conservative enough for v7x (64 MiB physical / 32 MiB scoped).
    """
    divisors = [d for d in range(1, B + 1) if B % d == 0]
    fits = [d for d in divisors if d * T * row_bytes <= vmem_budget]
    if not fits:                      # awkward/huge B: fall back to smallest divisor
        fits = [min(divisors)]
    bb = max(fits)
    if bb == B:
        split = [d for d in fits if B // d >= 2 and d * T >= min_rows_per_core]
        if split:
            bb = max(split)
    return bb


def block_forward(x, mask, params):
    B, T, C = x.shape
    assert C == N_EMBD

    w_slab, wo, v_slab = _pack_params(params)
    # additive key-padding bias: 0 for valid tokens, -1e9 for pads
    mask_bias = jnp.where(mask == 0.0, jnp.float32(NEG), jnp.float32(0.0)).reshape(B, 1, T)

    bb = _pick_block_b(B, T)
    grid = (B // bb,)
    const2 = lambda b: (0, 0)

    return pl.pallas_call(
        block_kernel,
        out_shape=jax.ShapeDtypeStruct((B, T, C), jnp.float32),
        grid_spec=pltpu.PrefetchScalarGridSpec(
            num_scalar_prefetch=0,
            grid=grid,
            in_specs=[
                pl.BlockSpec((bb, T, C), lambda b: (b, 0, 0)),
                pl.BlockSpec((bb, 1, T), lambda b: (b, 0, 0)),
                pl.BlockSpec(w_slab.shape, const2),
                pl.BlockSpec(wo.shape, const2),
                pl.BlockSpec(v_slab.shape, const2),
            ],
            out_specs=pl.BlockSpec((bb, T, C), lambda b: (b, 0, 0)),
        ),
        compiler_params=pltpu.CompilerParams(dimension_semantics=("parallel",)),
    )(x, mask_bias, w_slab, wo, v_slab)


# ---------------------------------------------------------------------------
# pure-JAX reference (mirrors the PyTorch module, eval mode)
# ---------------------------------------------------------------------------
def block_reference(x, mask, p):
    B, T, C = x.shape
    hd = C // N_HEAD
    hp = jax.lax.Precision.HIGHEST

    def lin(v, w, b):
        return jnp.einsum("btc,cd->btd", v, w, precision=hp) + b

    q = lin(x, p["wq"], p["bq"]).reshape(B, T, N_HEAD, hd).transpose(0, 2, 1, 3)
    k = lin(x, p["wk"], p["bk"]).reshape(B, T, N_HEAD, hd).transpose(0, 2, 1, 3)
    v = lin(x, p["wv"], p["bv"]).reshape(B, T, N_HEAD, hd).transpose(0, 2, 1, 3)
    att = jnp.einsum("bhqd,bhkd->bhqk", q, k, precision=hp) * (1.0 / math.sqrt(hd))
    att = jnp.where(mask[:, None, None, :] == 0.0, NEG, att)
    att = _softmax_ref(att)
    y = jnp.einsum("bhqk,bhkd->bhqd", att, v, precision=hp)
    y = y.transpose(0, 2, 1, 3).reshape(B, T, C)
    y = lin(y, p["wp"], p["bp"])
    ad = lin(_gelu_ref(lin(y, p["a1w"], p["a1b"])), p["a2w"], p["a2b"])
    h1 = _layernorm(ad + y + x, p["g1"], p["be1"])
    t = _gelu_ref(lin(h1, p["wi"], p["bi"]))
    t = lin(t, p["wo"], p["bo"])
    ad2 = lin(_gelu_ref(lin(t, p["c1w"], p["c1b"])), p["c2w"], p["c2b"])
    return _layernorm(h1 + ad2 + t, p["g2"], p["be2"])


# ---------------------------------------------------------------------------
# deterministic parameter init
# ---------------------------------------------------------------------------
def init_params(key):
    def dense(k, fan_in, fan_out):
        kw, kb = jax.random.split(k)
        w = jax.random.normal(kw, (fan_in, fan_out), jnp.float32) * 0.05
        b = jax.random.normal(kb, (1, fan_out), jnp.float32) * 0.05
        return w, b

    ks = jax.random.split(key, 10)
    p = {}
    p["wq"], p["bq"] = dense(ks[0], N_EMBD, N_EMBD)
    p["wk"], p["bk"] = dense(ks[1], N_EMBD, N_EMBD)
    p["wv"], p["bv"] = dense(ks[2], N_EMBD, N_EMBD)
    p["wp"], p["bp"] = dense(ks[3], N_EMBD, N_EMBD)
    p["g1"] = jnp.ones((1, N_EMBD), jnp.float32)
    p["be1"] = jnp.zeros((1, N_EMBD), jnp.float32)
    p["a1w"], p["a1b"] = dense(ks[4], N_EMBD, DOWN)
    p["a2w"], p["a2b"] = dense(ks[5], DOWN, N_EMBD)
    p["wi"], p["bi"] = dense(ks[6], N_EMBD, 4 * N_EMBD)
    p["wo"], p["bo"] = dense(ks[7], 4 * N_EMBD, N_EMBD)
    p["g2"] = jnp.ones((1, N_EMBD), jnp.float32)
    p["be2"] = jnp.zeros((1, N_EMBD), jnp.float32)
    p["c1w"], p["c1b"] = dense(ks[8], N_EMBD, DOWN)
    p["c2w"], p["c2b"] = dense(ks[9], DOWN, N_EMBD)
    return p


if __name__ == "__main__":
    B, T, C = 2, 8, N_EMBD
    key = jax.random.PRNGKey(0)
    kx, kp = jax.random.split(key)

    x = jax.random.normal(kx, (B, T, C), jnp.float32)
    # attention mask: 1 = valid token, 0 = padding (last two positions padded)
    mask = jnp.concatenate(
        [jnp.ones((B, T - 2), jnp.float32), jnp.zeros((B, 2), jnp.float32)], axis=1)

    params = init_params(kp)

    out = jax.block_until_ready(block_forward(x, mask, params))
    ref = block_reference(x, mask, params)

    assert out.shape == (B, T, C)
    max_err = float(jnp.max(jnp.abs(out - ref)))
    assert max_err < 1e-3, f"mismatch vs reference, max_err={max_err}"
    print("KERNEL_OK")
</pallas_src>

<mosaic_0001>
module attributes {stable_mosaic.version = 11 : i64} {
  func.func @block_kernel(%arg0: i32, %arg1: memref<2x8x32xf32, #tpu.memory_space<vmem>>, %arg2: memref<2x1x8xf32, #tpu.memory_space<vmem>>, %arg3: memref<32x512xf32, #tpu.memory_space<vmem>>, %arg4: memref<128x32xf32, #tpu.memory_space<vmem>>, %arg5: memref<12x128xf32, #tpu.memory_space<vmem>>, %arg6: memref<2x8x32xf32, #tpu.memory_space<vmem>>) attributes {dimension_semantics = [#tpu.dimension_semantics<parallel>], iteration_bounds = array<i64: 1>, scalar_prefetch = 0 : i64, scratch_operands = 0 : i64, tpu.core_type = #tpu.core_type<tc>, window_params = [{transform_indices = @transform_0, window_bounds = array<i64: 2, 8, 32>}, {transform_indices = @transform_1, window_bounds = array<i64: 2, 1, 8>}, {pipeline_mode = #tpu.pipeline_mode<synchronous>, transform_indices = @transform_2, window_bounds = array<i64: 32, 512>}, {pipeline_mode = #tpu.pipeline_mode<synchronous>, transform_indices = @transform_3, window_bounds = array<i64: 128, 32>}, {pipeline_mode = #tpu.pipeline_mode<synchronous>, transform_indices = @transform_4, window_bounds = array<i64: 12, 128>}, {transform_indices = @transform_5, window_bounds = array<i64: 2, 8, 32>}]} {
    %c0 = arith.constant 0 : index
    %c0_0 = arith.constant 0 : index
    %c0_1 = arith.constant 0 : index
    %0 = vector.load %arg1[%c0, %c0_0, %c0_1] : memref<2x8x32xf32, #tpu.memory_space<vmem>>, vector<2x8x32xf32>
    %1 = vector.shape_cast %0 : vector<2x8x32xf32> to vector<16x32xf32>
    %c0_2 = arith.constant 0 : index
    %c0_3 = arith.constant 0 : index
    %2 = vector.load %arg3[%c0_2, %c0_3] : memref<32x512xf32, #tpu.memory_space<vmem>>, vector<32x512xf32>
    %c0_4 = arith.constant 0 : index
    %c0_5 = arith.constant 0 : index
    %3 = vector.load %arg5[%c0_4, %c0_5] : memref<12x128xf32, #tpu.memory_space<vmem>>, vector<12x128xf32>
    %c0_6 = arith.constant 0 : index
    %c0_7 = arith.constant 0 : index
    %4 = vector.load %arg4[%c0_6, %c0_7] : memref<128x32xf32, #tpu.memory_space<vmem>>, vector<128x32xf32>
    %5 = vector.extract_strided_slice %2 {offsets = [0, 0], sizes = [32, 128], strides = [1, 1]} : vector<32x512xf32> to vector<32x128xf32>
    %6 = vector.extract_strided_slice %2 {offsets = [0, 128], sizes = [32, 128], strides = [1, 1]} : vector<32x512xf32> to vector<32x128xf32>
    %7 = vector.extract_strided_slice %2 {offsets = [0, 256], sizes = [32, 32], strides = [1, 1]} : vector<32x512xf32> to vector<32x32xf32>
    %8 = vector.extract_strided_slice %2 {offsets = [0, 288], sizes = [32, 32], strides = [1, 1]} : vector<32x512xf32> to vector<32x32xf32>
    %9 = vector.extract_strided_slice %2 {offsets = [0, 320], sizes = [32, 32], strides = [1, 1]} : vector<32x512xf32> to vector<32x32xf32>
    %10 = vector.extract_strided_slice %2 {offsets = [0, 352], sizes = [32, 32], strides = [1, 1]} : vector<32x512xf32> to vector<32x32xf32>
    %11 = vector.extract_strided_slice %2 {offsets = [0, 384], sizes = [32, 32], strides = [1, 1]} : vector<32x512xf32> to vector<32x32xf32>
    %12 = vector.extract_strided_slice %3 {offsets = [0, 0], sizes = [1, 128], strides = [1, 1]} : vector<12x128xf32> to vector<1x128xf32>
    %13 = vector.extract_strided_slice %3 {offsets = [1, 0], sizes = [1, 128], strides = [1, 1]} : vector<12x128xf32> to vector<1x128xf32>
    %14 = vector.extract_strided_slice %3 {offsets = [2, 0], sizes = [1, 32], strides = [1, 1]} : vector<12x128xf32> to vector<1x32xf32>
    %15 = vector.extract_strided_slice %3 {offsets = [3, 0], sizes = [1, 32], strides = [1, 1]} : vector<12x128xf32> to vector<1x32xf32>
    %16 = vector.extract_strided_slice %3 {offsets = [4, 0], sizes = [1, 32], strides = [1, 1]} : vector<12x128xf32> to vector<1x32xf32>
    %17 = vector.extract_strided_slice %3 {offsets = [5, 0], sizes = [1, 32], strides = [1, 1]} : vector<12x128xf32> to vector<1x32xf32>
    %18 = vector.extract_strided_slice %3 {offsets = [6, 0], sizes = [1, 32], strides = [1, 1]} : vector<12x128xf32> to vector<1x32xf32>
    %19 = vector.extract_strided_slice %3 {offsets = [7, 0], sizes = [1, 32], strides = [1, 1]} : vector<12x128xf32> to vector<1x32xf32>
    %20 = vector.extract_strided_slice %3 {offsets = [8, 0], sizes = [1, 32], strides = [1, 1]} : vector<12x128xf32> to vector<1x32xf32>
    %21 = vector.extract_strided_slice %3 {offsets = [9, 0], sizes = [1, 32], strides = [1, 1]} : vector<12x128xf32> to vector<1x32xf32>
    %22 = vector.extract_strided_slice %3 {offsets = [10, 0], sizes = [1, 32], strides = [1, 1]} : vector<12x128xf32> to vector<1x32xf32>
    %23 = vector.extract_strided_slice %3 {offsets = [11, 0], sizes = [1, 32], strides = [1, 1]} : vector<12x128xf32> to vector<1x32xf32>
    %cst = arith.constant dense<0.000000e+00> : vector<16x128xf32>
    %24 = tpu.matmul %1, %5, %cst {dimension_numbers = #tpu.dot_dimension_numbers<[1], [0], [0], [1], [0, 0, 1, 1], [], []>} : vector<16x32xf32>, vector<32x128xf32>, vector<16x128xf32> -> vector<16x128xf32>
    %25 = vector.broadcast %12 : vector<1x128xf32> to vector<16x128xf32>
    %26 = arith.addf %24, %25 : vector<16x128xf32>
    %27 = vector.extract_strided_slice %26 {offsets = [0, 0], sizes = [16, 8], strides = [1, 1]} : vector<16x128xf32> to vector<16x8xf32>
    %28 = vector.shape_cast %27 : vector<16x8xf32> to vector<2x8x8xf32>
    %29 = vector.extract_strided_slice %26 {offsets = [0, 8], sizes = [16, 8], strides = [1, 1]} : vector<16x128xf32> to vector<16x8xf32>
    %30 = vector.shape_cast %29 : vector<16x8xf32> to vector<2x8x8xf32>
    %31 = vector.extract_strided_slice %26 {offsets = [0, 16], sizes = [16, 8], strides = [1, 1]} : vector<16x128xf32> to vector<16x8xf32>
    %32 = vector.shape_cast %31 : vector<16x8xf32> to vector<2x8x8xf32>
    %33 = vector.extract_strided_slice %26 {offsets = [0, 24], sizes = [16, 8], strides = [1, 1]} : vector<16x128xf32> to vector<16x8xf32>
    %34 = vector.shape_cast %33 : vector<16x8xf32> to vector<2x8x8xf32>
    %35 = tpu.concatenate %28, %30, %32, %34 in 0 : vector<2x8x8xf32>, vector<2x8x8xf32>, vector<2x8x8xf32>, vector<2x8x8xf32> -> vector<8x8x8xf32>
    %36 = vector.extract_strided_slice %26 {offsets = [0, 32], sizes = [16, 8], strides = [1, 1]} : vector<16x128xf32> to vector<16x8xf32>
    %37 = vector.shape_cast %36 : vector<16x8xf32> to vector<2x8x8xf32>
    %38 = vector.extract_strided_slice %26 {offsets = [0, 40], sizes = [16, 8], strides = [1, 1]} : vector<16x128xf32> to vector<16x8xf32>
    %39 = vector.shape_cast %38 : vector<16x8xf32> to vector<2x8x8xf32>
    %40 = vector.extract_strided_slice %26 {offsets = [0, 48], sizes = [16, 8], strides = [1, 1]} : vector<16x128xf32> to vector<16x8xf32>
    %41 = vector.shape_cast %40 : vector<16x8xf32> to vector<2x8x8xf32>
    %42 = vector.extract_strided_slice %26 {offsets = [0, 56], sizes = [16, 8], strides = [1, 1]} : vector<16x128xf32> to vector<16x8xf32>
    %43 = vector.shape_cast %42 : vector<16x8xf32> to vector<2x8x8xf32>
    %44 = tpu.concatenate %37, %39, %41, %43 in 0 : vector<2x8x8xf32>, vector<2x8x8xf32>, vector<2x8x8xf32>, vector<2x8x8xf32> -> vector<8x8x8xf32>
    %45 = vector.extract_strided_slice %26 {offsets = [0, 64], sizes = [16, 8], strides = [1, 1]} : vector<16x128xf32> to vector<16x8xf32>
    %46 = vector.shape_cast %45 : vector<16x8xf32> to vector<2x8x8xf32>
    %47 = vector.extract_strided_slice %26 {offsets = [0, 72], sizes = [16, 8], strides = [1, 1]} : vector<16x128xf32> to vector<16x8xf32>
    %48 = vector.shape_cast %47 : vector<16x8xf32> to vector<2x8x8xf32>
    %49 = vector.extract_strided_slice %26 {offsets = [0, 80], sizes = [16, 8], strides = [1, 1]} : vector<16x128xf32> to vector<16x8xf32>
    %50 = vector.shape_cast %49 : vector<16x8xf32> to vector<2x8x8xf32>
    %51 = vector.extract_strided_slice %26 {offsets = [0, 88], sizes = [16, 8], strides = [1, 1]} : vector<16x128xf32> to vector<16x8xf32>
    %52 = vector.shape_cast %51 : vector<16x8xf32> to vector<2x8x8xf32>
    %53 = tpu.concatenate %46, %48, %50, %52 in 0 : vector<2x8x8xf32>, vector<2x8x8xf32>, vector<2x8x8xf32>, vector<2x8x8xf32> -> vector<8x8x8xf32>
    %c0_8 = arith.constant 0 : index
    %c0_9 = arith.constant 0 : index
    %c0_10 = arith.constant 0 : index
    %54 = vector.load %arg2[%c0_8, %c0_9, %c0_10] : memref<2x1x8xf32, #tpu.memory_space<vmem>>, vector<2x1x8xf32>
    %55 = tpu.concatenate %54, %54, %54, %54 in 0 : vector<2x1x8xf32>, vector<2x1x8xf32>, vector<2x1x8xf32>, vector<2x1x8xf32> -> vector<8x1x8xf32>
    "tpu.trace_start"() <{level = 10 : i32, message = "bqd,bkd->bqk"}> : () -> ()
    %cst_11 = arith.constant dense<0.000000e+00> : vector<8x8x8xf32>
    %56 = tpu.matmul %35, %44, %cst_11 {dimension_numbers = #tpu.dot_dimension_numbers<[2], [2], [1], [1], [0, 0, 0, 1, 1, 1], [0], [0]>} : vector<8x8x8xf32>, vector<8x8x8xf32>, vector<8x8x8xf32> -> vector<8x8x8xf32>
    "tpu.trace_stop"() : () -> ()
    %cst_12 = arith.constant 0.353553385 : f32
    %57 = vector.broadcast %cst_12 : f32 to vector<8x8x8xf32>
    %58 = arith.mulf %56, %57 : vector<8x8x8xf32>
    %59 = vector.broadcast %55 : vector<8x1x8xf32> to vector<8x8x8xf32>
    %60 = arith.addf %58, %59 : vector<8x8x8xf32>
    %cst_13 = arith.constant dense<0xFF800000> : vector<8x8xf32>
    %61 = vector.multi_reduction <maximumf>, %60, %cst_13 [2] : vector<8x8x8xf32> to vector<8x8xf32>
    %62 = vector.shape_cast %61 : vector<8x8xf32> to vector<8x8x1xf32>
    %63 = vector.broadcast %62 : vector<8x8x1xf32> to vector<8x8x8xf32>
    %64 = arith.subf %60, %63 : vector<8x8x8xf32>
    %65 = math.exp %64 : vector<8x8x8xf32>
    %cst_14 = arith.constant dense<0.000000e+00> : vector<8x8xf32>
    %66 = vector.multi_reduction <add>, %65, %cst_14 [2] : vector<8x8x8xf32> to vector<8x8xf32>
    %67 = vector.shape_cast %66 : vector<8x8xf32> to vector<8x8x1xf32>
    %68 = tpu.reciprocal %67 : vector<8x8x1xf32> -> vector<8x8x1xf32>
    %69 = vector.broadcast %68 : vector<8x8x1xf32> to vector<8x8x8xf32>
    %70 = arith.mulf %65, %69 : vector<8x8x8xf32>
    "tpu.trace_start"() <{level = 10 : i32, message = "bqk,bkd->bqd"}> : () -> ()
    %cst_15 = arith.constant dense<0.000000e+00> : vector<8x8x8xf32>
    %71 = tpu.matmul %70, %53, %cst_15 {dimension_numbers = #tpu.dot_dimension_numbers<[2], [1], [1], [2], [0, 0, 0, 1, 1, 2], [0], [0]>} : vector<8x8x8xf32>, vector<8x8x8xf32>, vector<8x8x8xf32> -> vector<8x8x8xf32>
    "tpu.trace_stop"() : () -> ()
    %72 = vector.extract_strided_slice %71 {offsets = [0, 0, 0], sizes = [2, 8, 8], strides = [1, 1, 1]} : vector<8x8x8xf32> to vector<2x8x8xf32>
    %73 = vector.shape_cast %72 : vector<2x8x8xf32> to vector<16x8xf32>
    %74 = vector.extract_strided_slice %71 {offsets = [2, 0, 0], sizes = [2, 8, 8], strides = [1, 1, 1]} : vector<8x8x8xf32> to vector<2x8x8xf32>
    %75 = vector.shape_cast %74 : vector<2x8x8xf32> to vector<16x8xf32>
    %76 = vector.extract_strided_slice %71 {offsets = [4, 0, 0], sizes = [2, 8, 8], strides = [1, 1, 1]} : vector<8x8x8xf32> to vector<2x8x8xf32>
    %77 = vector.shape_cast %76 : vector<2x8x8xf32> to vector<16x8xf32>
    %78 = vector.extract_strided_slice %71 {offsets = [6, 0, 0], sizes = [2, 8, 8], strides = [1, 1, 1]} : vector<8x8x8xf32> to vector<2x8x8xf32>
    %79 = vector.shape_cast %78 : vector<2x8x8xf32> to vector<16x8xf32>
    %80 = tpu.concatenate %73, %75, %77, %79 in 1 : vector<16x8xf32>, vector<16x8xf32>, vector<16x8xf32>, vector<16x8xf32> -> vector<16x32xf32>
    %cst_16 = arith.constant dense<0.000000e+00> : vector<16x32xf32>
    %81 = tpu.matmul %80, %7, %cst_16 {dimension_numbers = #tpu.dot_dimension_numbers<[1], [0], [0], [1], [0, 0, 1, 1], [], []>} : vector<16x32xf32>, vector<32x32xf32>, vector<16x32xf32> -> vector<16x32xf32>
    %82 = vector.broadcast %14 : vector<1x32xf32> to vector<16x32xf32>
    %83 = arith.addf %81, %82 : vector<16x32xf32>
    %cst_17 = arith.constant dense<0.000000e+00> : vector<16x32xf32>
    %84 = tpu.matmul %83, %8, %cst_17 {dimension_numbers = #tpu.dot_dimension_numbers<[1], [0], [0], [1], [0, 0, 1, 1], [], []>} : vector<16x32xf32>, vector<32x32xf32>, vector<16x32xf32> -> vector<16x32xf32>
    %85 = vector.broadcast %15 : vector<1x32xf32> to vector<16x32xf32>
    %86 = arith.addf %84, %85 : vector<16x32xf32>
    %cst_18 = arith.constant 5.000000e-01 : f32
    %87 = vector.broadcast %cst_18 : f32 to vector<16x32xf32>
    %88 = arith.mulf %87, %86 : vector<16x32xf32>
    %cst_19 = arith.constant 0.707106769 : f32
    %89 = vector.broadcast %cst_19 : f32 to vector<16x32xf32>
    %90 = arith.mulf %86, %89 : vector<16x32xf32>
    %91 = math.absf %90 : vector<16x32xf32>
    %cst_20 = arith.constant 0.327591091 : f32
    %92 = vector.broadcast %cst_20 : f32 to vector<16x32xf32>
    %93 = arith.mulf %92, %91 : vector<16x32xf32>
    %cst_21 = arith.constant 1.000000e+00 : f32
    %94 = vector.broadcast %cst_21 : f32 to vector<16x32xf32>
    %95 = arith.addf %94, %93 : vector<16x32xf32>
    %96 = tpu.reciprocal %95 : vector<16x32xf32> -> vector<16x32xf32>
    %cst_22 = arith.constant 1.06140542 : f32
    %97 = vector.broadcast %cst_22 : f32 to vector<16x32xf32>
    %98 = arith.mulf %97, %96 : vector<16x32xf32>
    %cst_23 = arith.constant -1.45315206 : f32
    %99 = vector.broadcast %cst_23 : f32 to vector<16x32xf32>
    %100 = arith.addf %98, %99 : vector<16x32xf32>
    %101 = arith.mulf %100, %96 : vector<16x32xf32>
    %cst_24 = arith.constant 1.42141378 : f32
    %102 = vector.broadcast %cst_24 : f32 to vector<16x32xf32>
    %103 = arith.addf %101, %102 : vector<16x32xf32>
    %104 = arith.mulf %103, %96 : vector<16x32xf32>
    %cst_25 = arith.constant -0.284496725 : f32
    %105 = vector.broadcast %cst_25 : f32 to vector<16x32xf32>
    %106 = arith.addf %104, %105 : vector<16x32xf32>
    %107 = arith.mulf %106, %96 : vector<16x32xf32>
    %cst_26 = arith.constant 0.254829586 : f32
    %108 = vector.broadcast %cst_26 : f32 to vector<16x32xf32>
    %109 = arith.addf %107, %108 : vector<16x32xf32>
    %110 = arith.mulf %109, %96 : vector<16x32xf32>
    %cst_27 = arith.constant 0.000000e+00 : f32
    %111 = vector.broadcast %cst_27 : f32 to vector<16x32xf32>
    %112 = arith.subf %111, %91 : vector<16x32xf32>
    %113 = arith.mulf %112, %91 : vector<16x32xf32>
    %114 = math.exp %113 : vector<16x32xf32>
    %115 = arith.mulf %110, %114 : vector<16x32xf32>
    %cst_28 = arith.constant 1.000000e+00 : f32
    %116 = vector.broadcast %cst_28 : f32 to vector<16x32xf32>
    %117 = arith.subf %116, %115 : vector<16x32xf32>
    %cst_29 = arith.constant 0.000000e+00 : f32
    %118 = vector.broadcast %cst_29 : f32 to vector<16x32xf32>
    %119 = arith.cmpf oge, %90, %118 : vector<16x32xf32>
    %cst_30 = arith.constant 0.000000e+00 : f32
    %120 = vector.broadcast %cst_30 : f32 to vector<16x32xf32>
    %121 = arith.subf %120, %117 : vector<16x32xf32>
    %122 = arith.select %119, %117, %121 : vector<16x32xi1>, vector<16x32xf32>
    %cst_31 = arith.constant 1.000000e+00 : f32
    %123 = vector.broadcast %cst_31 : f32 to vector<16x32xf32>
    %124 = arith.addf %123, %122 : vector<16x32xf32>
    %125 = arith.mulf %88, %124 : vector<16x32xf32>
    %cst_32 = arith.constant dense<0.000000e+00> : vector<16x32xf32>
    %126 = tpu.matmul %125, %9, %cst_32 {dimension_numbers = #tpu.dot_dimension_numbers<[1], [0], [0], [1], [0, 0, 1, 1], [], []>} : vector<16x32xf32>, vector<32x32xf32>, vector<16x32xf32> -> vector<16x32xf32>
    %127 = vector.broadcast %16 : vector<1x32xf32> to vector<16x32xf32>
    %128 = arith.addf %126, %127 : vector<16x32xf32>
    %129 = arith.addf %128, %83 : vector<16x32xf32>
    %130 = arith.addf %129, %1 : vector<16x32xf32>
    %cst_33 = arith.constant dense<0.000000e+00> : vector<16xf32>
    %131 = vector.multi_reduction <add>, %130, %cst_33 [1] : vector<16x32xf32> to vector<16xf32>
    %132 = vector.shape_cast %131 : vector<16xf32> to vector<16x1xf32>
    %cst_34 = arith.constant 3.200000e+01 : f32
    %133 = vector.broadcast %cst_34 : f32 to vector<16x1xf32>
    %134 = arith.divf %132, %133 : vector<16x1xf32>
    %135 = vector.broadcast %134 : vector<16x1xf32> to vector<16x32xf32>
    %136 = arith.subf %130, %135 : vector<16x32xf32>
    %137 = arith.mulf %136, %136 : vector<16x32xf32>
    %cst_35 = arith.constant dense<0.000000e+00> : vector<16xf32>
    %138 = vector.multi_reduction <add>, %137, %cst_35 [1] : vector<16x32xf32> to vector<16xf32>
    %139 = vector.shape_cast %138 : vector<16xf32> to vector<16x1xf32>
    %cst_36 = arith.constant 3.200000e+01 : f32
    %140 = vector.broadcast %cst_36 : f32 to vector<16x1xf32>
    %141 = arith.divf %139, %140 : vector<16x1xf32>
    %142 = vector.broadcast %134 : vector<16x1xf32> to vector<16x32xf32>
    %143 = arith.subf %130, %142 : vector<16x32xf32>
    %cst_37 = arith.constant 9.99999996E-13 : f32
    %144 = vector.broadcast %cst_37 : f32 to vector<16x1xf32>
    %145 = arith.addf %141, %144 : vector<16x1xf32>
    %146 = math.rsqrt %145 : vector<16x1xf32>
    %147 = vector.broadcast %146 : vector<16x1xf32> to vector<16x32xf32>
    %148 = arith.mulf %143, %147 : vector<16x32xf32>
    %149 = vector.broadcast %20 : vector<1x32xf32> to vector<16x32xf32>
    %150 = arith.mulf %148, %149 : vector<16x32xf32>
    %151 = vector.broadcast %21 : vector<1x32xf32> to vector<16x32xf32>
    %152 = arith.addf %150, %151 : vector<16x32xf32>
    %cst_38 = arith.constant dense<0.000000e+00> : vector<16x128xf32>
    %153 = tpu.matmul %152, %6, %cst_38 {dimension_numbers = #tpu.dot_dimension_numbers<[1], [0], [0], [1], [0, 0, 1, 1], [], []>} : vector<16x32xf32>, vector<32x128xf32>, vector<16x128xf32> -> vector<16x128xf32>
    %154 = vector.broadcast %13 : vector<1x128xf32> to vector<16x128xf32>
    %155 = arith.addf %153, %154 : vector<16x128xf32>
    %cst_39 = arith.constant 5.000000e-01 : f32
    %156 = vector.broadcast %cst_39 : f32 to vector<16x128xf32>
    %157 = arith.mulf %156, %155 : vector<16x128xf32>
    %cst_40 = arith.constant 0.707106769 : f32
    %158 = vector.broadcast %cst_40 : f32 to vector<16x128xf32>
    %159 = arith.mulf %155, %158 : vector<16x128xf32>
    %160 = math.absf %159 : vector<16x128xf32>
    %cst_41 = arith.constant 0.327591091 : f32
    %161 = vector.broadcast %cst_41 : f32 to vector<16x128xf32>
    %162 = arith.mulf %161, %160 : vector<16x128xf32>
    %cst_42 = arith.constant 1.000000e+00 : f32
    %163 = vector.broadcast %cst_42 : f32 to vector<16x128xf32>
    %164 = arith.addf %163, %162 : vector<16x128xf32>
    %165 = tpu.reciprocal %164 : vector<16x128xf32> -> vector<16x128xf32>
    %cst_43 = arith.constant 1.06140542 : f32
    %166 = vector.broadcast %cst_43 : f32 to vector<16x128xf32>
    %167 = arith.mulf %166, %165 : vector<16x128xf32>
    %cst_44 = arith.constant -1.45315206 : f32
    %168 = vector.broadcast %cst_44 : f32 to vector<16x128xf32>
    %169 = arith.addf %167, %168 : vector<16x128xf32>
    %170 = arith.mulf %169, %165 : vector<16x128xf32>
    %cst_45 = arith.constant 1.42141378 : f32
    %171 = vector.broadcast %cst_45 : f32 to vector<16x128xf32>
    %172 = arith.addf %170, %171 : vector<16x128xf32>
    %173 = arith.mulf %172, %165 : vector<16x128xf32>
    %cst_46 = arith.constant -0.284496725 : f32
    %174 = vector.broadcast %cst_46 : f32 to vector<16x128xf32>
    %175 = arith.addf %173, %174 : vector<16x128xf32>
    %176 = arith.mulf %175, %165 : vector<16x128xf32>
    %cst_47 = arith.constant 0.254829586 : f32
    %177 = vector.broadcast %cst_47 : f32 to vector<16x128xf32>
    %178 = arith.addf %176, %177 : vector<16x128xf32>
    %179 = arith.mulf %178, %165 : vector<16x128xf32>
    %cst_48 = arith.constant 0.000000e+00 : f32
    %180 = vector.broadcast %cst_48 : f32 to vector<16x128xf32>
    %181 = arith.subf %180, %160 : vector<16x128xf32>
    %182 = arith.mulf %181, %160 : vector<16x128xf32>
    %183 = math.exp %182 : vector<16x128xf32>
    %184 = arith.mulf %179, %183 : vector<16x128xf32>
    %cst_49 = arith.constant 1.000000e+00 : f32
    %185 = vector.broadcast %cst_49 : f32 to vector<16x128xf32>
    %186 = arith.subf %185, %184 : vector<16x128xf32>
    %cst_50 = arith.constant 0.000000e+00 : f32
    %187 = vector.broadcast %cst_50 : f32 to vector<16x128xf32>
    %188 = arith.cmpf oge, %159, %187 : vector<16x128xf32>
    %cst_51 = arith.constant 0.000000e+00 : f32
    %189 = vector.broadcast %cst_51 : f32 to vector<16x128xf32>
    %190 = arith.subf %189, %186 : vector<16x128xf32>
    %191 = arith.select %188, %186, %190 : vector<16x128xi1>, vector<16x128xf32>
    %cst_52 = arith.constant 1.000000e+00 : f32
    %192 = vector.broadcast %cst_52 : f32 to vector<16x128xf32>
    %193 = arith.addf %192, %191 : vector<16x128xf32>
    %194 = arith.mulf %157, %193 : vector<16x128xf32>
    %cst_53 = arith.constant dense<0.000000e+00> : vector<16x32xf32>
    %195 = tpu.matmul %194, %4, %cst_53 {dimension_numbers = #tpu.dot_dimension_numbers<[1], [0], [0], [1], [0, 0, 1, 1], [], []>} : vector<16x128xf32>, vector<128x32xf32>, vector<16x32xf32> -> vector<16x32xf32>
    %196 = vector.broadcast %17 : vector<1x32xf32> to vector<16x32xf32>
    %197 = arith.addf %195, %196 : vector<16x32xf32>
    %cst_54 = arith.constant dense<0.000000e+00> : vector<16x32xf32>
    %198 = tpu.matmul %197, %10, %cst_54 {dimension_numbers = #tpu.dot_dimension_numbers<[1], [0], [0], [1], [0, 0, 1, 1], [], []>} : vector<16x32xf32>, vector<32x32xf32>, vector<16x32xf32> -> vector<16x32xf32>
    %199 = vector.broadcast %18 : vector<1x32xf32> to vector<16x32xf32>
    %200 = arith.addf %198, %199 : vector<16x32xf32>
    %cst_55 = arith.constant 5.000000e-01 : f32
    %201 = vector.broadcast %cst_55 : f32 to vector<16x32xf32>
    %202 = arith.mulf %201, %200 : vector<16x32xf32>
    %cst_56 = arith.constant 0.707106769 : f32
    %203 = vector.broadcast %cst_56 : f32 to vector<16x32xf32>
    %204 = arith.mulf %200, %203 : vector<16x32xf32>
    %205 = math.absf %204 : vector<16x32xf32>
    %cst_57 = arith.constant 0.327591091 : f32
    %206 = vector.broadcast %cst_57 : f32 to vector<16x32xf32>
    %207 = arith.mulf %206, %205 : vector<16x32xf32>
    %cst_58 = arith.constant 1.000000e+00 : f32
    %208 = vector.broadcast %cst_58 : f32 to vector<16x32xf32>
    %209 = arith.addf %208, %207 : vector<16x32xf32>
    %210 = tpu.reciprocal %209 : vector<16x32xf32> -> vector<16x32xf32>
    %cst_59 = arith.constant 1.06140542 : f32
    %211 = vector.broadcast %cst_59 : f32 to vector<16x32xf32>
    %212 = arith.mulf %211, %210 : vector<16x32xf32>
    %cst_60 = arith.constant -1.45315206 : f32
    %213 = vector.broadcast %cst_60 : f32 to vector<16x32xf32>
    %214 = arith.addf %212, %213 : vector<16x32xf32>
    %215 = arith.mulf %214, %210 : vector<16x32xf32>
    %cst_61 = arith.constant 1.42141378 : f32
    %216 = vector.broadcast %cst_61 : f32 to vector<16x32xf32>
    %217 = arith.addf %215, %216 : vector<16x32xf32>
    %218 = arith.mulf %217, %210 : vector<16x32xf32>
    %cst_62 = arith.constant -0.284496725 : f32
    %219 = vector.broadcast %cst_62 : f32 to vector<16x32xf32>
    %220 = arith.addf %218, %219 : vector<16x32xf32>
    %221 = arith.mulf %220, %210 : vector<16x32xf32>
    %cst_63 = arith.constant 0.254829586 : f32
    %222 = vector.broadcast %cst_63 : f32 to vector<16x32xf32>
    %223 = arith.addf %221, %222 : vector<16x32xf32>
    %224 = arith.mulf %223, %210 : vector<16x32xf32>
    %cst_64 = arith.constant 0.000000e+00 : f32
    %225 = vector.broadcast %cst_64 : f32 to vector<16x32xf32>
    %226 = arith.subf %225, %205 : vector<16x32xf32>
    %227 = arith.mulf %226, %205 : vector<16x32xf32>
    %228 = math.exp %227 : vector<16x32xf32>
    %229 = arith.mulf %224, %228 : vector<16x32xf32>
    %cst_65 = arith.constant 1.000000e+00 : f32
    %230 = vector.broadcast %cst_65 : f32 to vector<16x32xf32>
    %231 = arith.subf %230, %229 : vector<16x32xf32>
    %cst_66 = arith.constant 0.000000e+00 : f32
    %232 = vector.broadcast %cst_66 : f32 to vector<16x32xf32>
    %233 = arith.cmpf oge, %204, %232 : vector<16x32xf32>
    %cst_67 = arith.constant 0.000000e+00 : f32
    %234 = vector.broadcast %cst_67 : f32 to vector<16x32xf32>
    %235 = arith.subf %234, %231 : vector<16x32xf32>
    %236 = arith.select %233, %231, %235 : vector<16x32xi1>, vector<16x32xf32>
    %cst_68 = arith.constant 1.000000e+00 : f32
    %237 = vector.broadcast %cst_68 : f32 to vector<16x32xf32>
    %238 = arith.addf %237, %236 : vector<16x32xf32>
    %239 = arith.mulf %202, %238 : vector<16x32xf32>
    %cst_69 = arith.constant dense<0.000000e+00> : vector<16x32xf32>
    %240 = tpu.matmul %239, %11, %cst_69 {dimension_numbers = #tpu.dot_dimension_numbers<[1], [0], [0], [1], [0, 0, 1, 1], [], []>} : vector<16x32xf32>, vector<32x32xf32>, vector<16x32xf32> -> vector<16x32xf32>
    %241 = vector.broadcast %19 : vector<1x32xf32> to vector<16x32xf32>
    %242 = arith.addf %240, %241 : vector<16x32xf32>
    %243 = arith.addf %152, %242 : vector<16x32xf32>
    %244 = arith.addf %243, %197 : vector<16x32xf32>
    %cst_70 = arith.constant dense<0.000000e+00> : vector<16xf32>
    %245 = vector.multi_reduction <add>, %244, %cst_70 [1] : vector<16x32xf32> to vector<16xf32>
    %246 = vector.shape_cast %245 : vector<16xf32> to vector<16x1xf32>
    %cst_71 = arith.constant 3.200000e+01 : f32
    %247 = vector.broadcast %cst_71 : f32 to vector<16x1xf32>
    %248 = arith.divf %246, %247 : vector<16x1xf32>
    %249 = vector.broadcast %248 : vector<16x1xf32> to vector<16x32xf32>
    %250 = arith.subf %244, %249 : vector<16x32xf32>
    %251 = arith.mulf %250, %250 : vector<16x32xf32>
    %cst_72 = arith.constant dense<0.000000e+00> : vector<16xf32>
    %252 = vector.multi_reduction <add>, %251, %cst_72 [1] : vector<16x32xf32> to vector<16xf32>
    %253 = vector.shape_cast %252 : vector<16xf32> to vector<16x1xf32>
    %cst_73 = arith.constant 3.200000e+01 : f32
    %254 = vector.broadcast %cst_73 : f32 to vector<16x1xf32>
    %255 = arith.divf %253, %254 : vector<16x1xf32>
    %256 = vector.broadcast %248 : vector<16x1xf32> to vector<16x32xf32>
    %257 = arith.subf %244, %256 : vector<16x32xf32>
    %cst_74 = arith.constant 9.99999996E-13 : f32
    %258 = vector.broadcast %cst_74 : f32 to vector<16x1xf32>
    %259 = arith.addf %255, %258 : vector<16x1xf32>
    %260 = math.rsqrt %259 : vector<16x1xf32>
    %261 = vector.broadcast %260 : vector<16x1xf32> to vector<16x32xf32>
    %262 = arith.mulf %257, %261 : vector<16x32xf32>
    %263 = vector.broadcast %22 : vector<1x32xf32> to vector<16x32xf32>
    %264 = arith.mulf %262, %263 : vector<16x32xf32>
    %265 = vector.broadcast %23 : vector<1x32xf32> to vector<16x32xf32>
    %266 = arith.addf %264, %265 : vector<16x32xf32>
    %267 = vector.shape_cast %266 : vector<16x32xf32> to vector<2x8x32xf32>
    %c0_75 = arith.constant 0 : index
    %c0_76 = arith.constant 0 : index
    %c0_77 = arith.constant 0 : index
    %268 = vector.load %arg6[%c0_75, %c0_76, %c0_77] : memref<2x8x32xf32, #tpu.memory_space<vmem>>, vector<2x8x32xf32>
    tpu.vector_store %arg6[%c0_75, %c0_76, %c0_77], %267 {strides = array<i32>} : memref<2x8x32xf32, #tpu.memory_space<vmem>>, vector<2x8x32xf32>,
    return
  }
  func.func @transform_0(%arg0: i32) -> (i32, i32, i32) {
    %c0_i32 = arith.constant 0 : i32
    %c0_i32_0 = arith.constant 0 : i32
    %c0_i32_1 = arith.constant 0 : i32
    return %arg0, %c0_i32, %c0_i32_0 : i32, i32, i32
  }
  func.func @transform_1(%arg0: i32) -> (i32, i32, i32) {
    %c0_i32 = arith.constant 0 : i32
    %c0_i32_0 = arith.constant 0 : i32
    %c0_i32_1 = arith.constant 0 : i32
    return %arg0, %c0_i32, %c0_i32_0 : i32, i32, i32
  }
  func.func @transform_2(%arg0: i32) -> (i32, i32) {
    %c0_i32 = arith.constant 0 : i32
    %c0_i32_0 = arith.constant 0 : i32
    %c0_i32_1 = arith.constant 0 : i32
    return %c0_i32, %c0_i32_0 : i32, i32
  }
  func.func @transform_3(%arg0: i32) -> (i32, i32) {
    %c0_i32 = arith.constant 0 : i32
    %c0_i32_0 = arith.constant 0 : i32
    %c0_i32_1 = arith.constant 0 : i32
    return %c0_i32, %c0_i32_0 : i32, i32
  }
  func.func @transform_4(%arg0: i32) -> (i32, i32) {
    %c0_i32 = arith.constant 0 : i32
    %c0_i32_0 = arith.constant 0 : i32
    %c0_i32_1 = arith.constant 0 : i32
    return %c0_i32, %c0_i32_0 : i32, i32
  }
  func.func @transform_5(%arg0: i32) -> (i32, i32, i32) {
    %c0_i32 = arith.constant 0 : i32
    %c0_i32_0 = arith.constant 0 : i32
    %c0_i32_1 = arith.constant 0 : i32
    return %arg0, %c0_i32, %c0_i32_0 : i32, i32, i32
  }
}

</mosaic_0001>

<llo_original>
// kernel: tpu_custom_call.1
$region0: #{tpu_custom_call.1}
  #allocation0 [shape = 'u32[]', space=smem, size = 0x4, offset = 0x4, fixed_abs, tag = 'smem constant byte address 0x4 - core index']
  #allocation1 [shape = 'u32[144,128]{1,0:T(1,128)}', space=vmem, size = 0x12000, scoped, tag = 'internal scratch']
  %s0 = inlined_call_operand.vmem [shape: f32[2,8,32], index: 0, kind: input, shape index: {}]
  %s1 = inlined_call_operand.vmem [shape: f32[2,1,8], index: 1, kind: input, shape index: {}]
  %s2 = inlined_call_operand.vmem [shape: f32[32,512], index: 2, kind: input, shape index: {}]
  %s3 = inlined_call_operand.vmem [shape: f32[128,32], index: 3, kind: input, shape index: {}]
  %s4 = inlined_call_operand.vmem [shape: f32[12,128], index: 4, kind: input, shape index: {}]
  %s5 = inlined_call_operand.hbm [shape: f32[2,8,32], index: 5, kind: output, shape index: {}]
  %s6 = sld [smem:[#allocation0]]
  $region30: #{tpu_custom_call.1} parent=0
    _
  %s8 = ssub.s32 1, %s6
  %s9 = scalar_select 0, %s8, %s6
  $region1: #{tpu_custom_call.1} parent=0
    #allocation2 [shape = 'u8[8192]{0}', space=vmem, size = 0x2000, scoped, tag = 'output window, operand 0, single buffered']
    #allocation3 [shape = 's32[1]{0}', space=sflag, size = 0x4, scoped, tag = 'scoped memory for tpu_custom_call.1']
    %10 = vsyncpa [#allocation3], 0
    // Predicated region
    $region2: #{tpu_custom_call.1} parent=1 // pred_check
      _
    $region3: #{tpu_custom_call.1} parent=1 // pred_check_branch
      %12 = sbr.rel (0) target = $region5
    $region4: #{tpu_custom_call.1} parent=1 // pred_region
      _
    $region5: #{tpu_custom_call.1} parent=1 // pred_fallthru
      _
    // Predicated region
    $region6: #{tpu_custom_call.1} parent=1 // pred_check
      _
    $region7: #{tpu_custom_call.1} parent=1 // pred_check_branch
      %14 = sbr.rel (0) target = $region9
    $region8: #{tpu_custom_call.1} parent=1 // pred_region
      _
    $region9: #{tpu_custom_call.1} parent=1 // pred_fallthru
      _
    // Predicated region
    $region10: #{tpu_custom_call.1} parent=1 // pred_check
      _
    $region11: #{tpu_custom_call.1} parent=1 // pred_check_branch
      %16 = sbr.rel (0) target = $region13
    $region12: #{tpu_custom_call.1} parent=1 // pred_region
      _
    $region13: #{tpu_custom_call.1} parent=1 // pred_fallthru
      _
    // Predicated region
    $region14: #{tpu_custom_call.1} parent=1 // pred_check
      _
    $region15: #{tpu_custom_call.1} parent=1 // pred_check_branch
      %18 = sbr.rel (0) target = $region17
    $region16: #{tpu_custom_call.1} parent=1 // pred_region
      _
    $region17: #{tpu_custom_call.1} parent=1 // pred_fallthru
      _
    // Predicated region
    $region18: #{tpu_custom_call.1} parent=1 // pred_check
      _
    $region19: #{tpu_custom_call.1} parent=1 // pred_check_branch
      %20 = sbr.rel (0) target = $region21
    $region20: #{tpu_custom_call.1} parent=1 // pred_region
      _
    $region21: #{tpu_custom_call.1} parent=1 // pred_fallthru
      _
    %v21 = vld [vmem:[%s0] sm:$0xff]
    %v22 = vld [vmem:[%s0 + $0x8] sm:$0xff]
    %v23 = vld [vmem:[%s2] sm:$0xff]
    %v24 = vld [vmem:[%s2 + $0x8] sm:$0xff]
    %v25 = vld [vmem:[%s2 + $0x10] sm:$0xff]
    %v26 = vld [vmem:[%s2 + $0x18] sm:$0xff]
    %v27 = vld [vmem:[%s2 + $0x20] sm:$0xff]
    %v28 = vld [vmem:[%s2 + $0x28] sm:$0xff]
    %v29 = vld [vmem:[%s2 + $0x30] sm:$0xff]
    %v30 = vld [vmem:[%s2 + $0x38] sm:$0xff]
    %v31 = vld [vmem:[%s2 + $0x40] sm:$0xff]
    %v32 = vld [vmem:[%s2 + $0x48] sm:$0xff]
    %v33 = vld [vmem:[%s2 + $0x50] sm:$0xff]
    %v34 = vld [vmem:[%s2 + $0x58] sm:$0xff]
    %v35 = vld [vmem:[%s2 + $0x60] sm:$0xff]
    %v36 = vld [vmem:[%s2 + $0x68] sm:$0xff]
    %v37 = vld [vmem:[%s2 + $0x70] sm:$0xff]
    %v38 = vld [vmem:[%s2 + $0x78] sm:$0xff]
    %v39 = vld [vmem:[%s4] sm:$0xff]
    %v40 = vld [vmem:[%s4 + $0x8] sm:$0xf]
    %v41 = vld [vmem:[%s3] sm:$0xff]
    %v42 = vld [vmem:[%s3 + $0x8] sm:$0xff]
    %v43 = vld [vmem:[%s3 + $0x10] sm:$0xff]
    %v44 = vld [vmem:[%s3 + $0x18] sm:$0xff]
    %v45 = vld [vmem:[%s3 + $0x20] sm:$0xff]
    %v46 = vld [vmem:[%s3 + $0x28] sm:$0xff]
    %v47 = vld [vmem:[%s3 + $0x30] sm:$0xff]
    %v48 = vld [vmem:[%s3 + $0x38] sm:$0xff]
    %v49 = vld [vmem:[%s3 + $0x40] sm:$0xff]
    %v50 = vld [vmem:[%s3 + $0x48] sm:$0xff]
    %v51 = vld [vmem:[%s3 + $0x50] sm:$0xff]
    %v52 = vld [vmem:[%s3 + $0x58] sm:$0xff]
    %v53 = vld [vmem:[%s3 + $0x60] sm:$0xff]
    %v54 = vld [vmem:[%s3 + $0x68] sm:$0xff]
    %v55 = vld [vmem:[%s3 + $0x70] sm:$0xff]
    %v56 = vld [vmem:[%s3 + $0x78] sm:$0xff]
    %v57 = vlaneseq
    %v58 = vshrl.u32 %v57, 7
    %v59 = vsub.s32 0, %v58
    %v60 = vrot.slane %v39, %v59
    %vm61 = vcmask 261120
    %v63 = vsel %vm61, %v21, 0
    %v66 = vsel %vm61, %v22, 0
    %68 = vmatprep.subr.mxu0 0.0
    %69 = vmatpush1.msra.mxu0 %v23
    %70 = vmatprep.subr.mxu0 0.0
    %71 = vmatpush1.msra.mxu0 %v27
    %72 = vmatprep.subr.mxu0 0.0
    %73 = vmatpush1.msra.mxu0 %v31
    %74 = vmatprep.subr.mxu0 0.0
    %75 = vmatpush1.msra.mxu0 %v35
    %76 = vmatprep.subr.mxu0 0.0
    %77 = vmatpush1.msra.mxu0 0.0
    %78 = vmatprep.subr.mxu0 0.0
    %79 = vmatpush1.msra.mxu0 0.0
    %80 = vmatprep.subr.mxu0 0.0
    %81 = vmatpush1.msra.mxu0 0.0
    %82 = vmatprep.subr.mxu0 0.0
    %83 = vmatpush1.msra.mxu0 0.0
    %84 = vmatprep.subr.mxu0 0.0
    %85 = vmatpush1.msra.mxu0 0.0
    %86 = vmatprep.subr.mxu0 0.0
    %87 = vmatpush1.msra.mxu0 0.0
    %88 = vmatprep.subr.mxu0 0.0
    %89 = vmatpush1.msra.mxu0 0.0
    %90 = vmatprep.subr.mxu0 0.0
    %91 = vmatpush1.msra.mxu0 0.0
    %92 = vmatprep.subr.mxu0 0.0
    %93 = vmatpush1.msra.mxu0 0.0
    %94 = vmatprep.subr.mxu0 0.0
    %95 = vmatpush1.msra.mxu0 0.0
    %96 = vmatprep.subr.mxu0 0.0
    %97 = vmatpush1.msra.mxu0 0.0
    %98 = vmatprep.subr.mxu0 0.0
    %99 = vmatpush1.msra.mxu0 0.0
    %100 = vmatprep.subr.mxu0 0.0
    %101 = vmatpush1.msra.mxu0 0.0
    %102 = vmatprep.subr.mxu0 0.0
    %103 = vmatpush1.msra.mxu0 0.0
    %104 = vmatprep.subr.mxu0 0.0
    %105 = vmatpush1.msra.mxu0 0.0
    %106 = vmatprep.subr.mxu0 0.0
    %107 = vmatpush1.msra.mxu0 0.0
    %108 = vmatprep.subr.mxu0 0.0
    %109 = vmatpush1.msra.mxu0 0.0
    %110 = vmatprep.subr.mxu0 0.0
    %111 = vmatpush1.msra.mxu0 0.0
    %112 = vmatprep.subr.mxu0 0.0
    %113 = vmatpush1.msra.mxu0 0.0
    %114 = vmatprep.subr.mxu0 0.0
    %115 = vmatpush1.msra.mxu0 0.0
    %116 = vmatprep.subr.mxu0 0.0
    %117 = vmatpush1.msra.mxu0 0.0
    %118 = vmatprep.subr.mxu0 0.0
    %119 = vmatpush1.msra.mxu0 0.0
    %120 = vmatprep.subr.mxu0 0.0
    %121 = vmatpush1.msra.mxu0 0.0
    %122 = vmatprep.subr.mxu0 0.0
    %123 = vmatpush1.msra.mxu0 0.0
    %124 = vmatprep.subr.mxu0 0.0
    %125 = vmatpush1.msra.mxu0 0.0
    %126 = vmatprep.subr.mxu0 0.0
    %127 = vmatpush1.msra.mxu0 0.0
    %128 = vmatprep.subr.mxu0 0.0
    %129 = vmatpush1.msra.mxu0 0.0
    %130 = vmatprep.subr.mxu0 0.0
    %131 = vmatpush1.msra.mxu0 0.0
    %132 = vmatprep.mubr.f32.mxu0 0.0
    %133 = vmatmul.mubr.f32.gmra.mrb[0].mxu0 %v63
    %v134 = vpop.f32.mrb[0].mxu0
    %v135 = vadd.f32 %v60, %v134
    %v136 = vpop.f32.mrb[0].mxu0
    %137 = vmatprep.mubr.f32.mxu0 0.0
    %138 = vmatmul.mubr.f32.gmra.mrb[0].mxu0 %v66
    %v139 = vpop.f32.mrb[0].mxu0
    %v140 = vadd.f32 %v60, %v139
    %v141 = vpop.f32.mrb[0].mxu0
    %142 = vdwg.mxu0
    %145 = vrot.lane.b32.xlu0 %v135, 120
    %v146 = vpop.permute.xlu0 %145
    %147 = vrot.lane.b32.xlu0 %v140, 120
    %v148 = vpop.permute.xlu0 %147
    %149 = vrot.lane.b32.xlu0 %v135, 112
    %v150 = vpop.permute.xlu0 %149
    %151 = vrot.lane.b32.xlu0 %v140, 112
    %v152 = vpop.permute.xlu0 %151
    %153 = vrot.lane.b32.xlu0 %v135, 104
    %v154 = vpop.permute.xlu0 %153
    %155 = vrot.lane.b32.xlu0 %v140, 104
    %v156 = vpop.permute.xlu0 %155
    %v157 = vld [vmem:[%s1] sm:$0x1]
    %v158 = vld [vmem:[%s1 + $0x1] sm:$0x1]
    %159 = vrot.lane.b32.xlu0 %v135, 96
    %v160 = vpop.permute.xlu0 %159
    %vm161 = vcmask 64512
    %v162 = vsel %vm161, %v135, 0
    %v164 = vsel %vm161, %v160, 0
    %166 = vmatprep.subr.mxu0 0.0
    %167 = vmatpush1.xpose.msra.mxu0 %v164
    %168 = vmatprep.subr.mxu0 0.0
    %169 = vmatpush1.xpose.msra.mxu0 0.0
    %170 = vmatprep.subr.mxu0 0.0
    %171 = vmatpush1.xpose.msra.mxu0 0.0
    %172 = vmatprep.subr.mxu0 0.0
    %173 = vmatpush1.xpose.msra.mxu0 0.0
    %174 = vmatprep.subr.mxu0 0.0
    %175 = vmatpush1.xpose.msra.mxu0 0.0
    %176 = vmatprep.subr.mxu0 0.0
    %177 = vmatpush1.xpose.msra.mxu0 0.0
    %178 = vmatprep.subr.mxu0 0.0
    %179 = vmatpush1.xpose.msra.mxu0 0.0
    %180 = vmatprep.subr.mxu0 0.0
    %181 = vmatpush1.xpose.msra.mxu0 0.0
    %182 = vmatprep.subr.mxu0 0.0
    %183 = vmatpush1.xpose.msra.mxu0 0.0
    %184 = vmatprep.subr.mxu0 0.0
    %185 = vmatpush1.xpose.msra.mxu0 0.0
    %186 = vmatprep.subr.mxu0 0.0
    %187 = vmatpush1.xpose.msra.mxu0 0.0
    %188 = vmatprep.subr.mxu0 0.0
    %189 = vmatpush1.xpose.msra.mxu0 0.0
    %190 = vmatprep.subr.mxu0 0.0
    %191 = vmatpush1.xpose.msra.mxu0 0.0
    %192 = vmatprep.subr.mxu0 0.0
    %193 = vmatpush1.xpose.msra.mxu0 0.0
    %194 = vmatprep.subr.mxu0 0.0
    %195 = vmatpush1.xpose.msra.mxu0 0.0
    %196 = vmatprep.subr.mxu0 0.0
    %197 = vmatpush1.xpose.msra.mxu0 0.0
    %198 = vmatprep.subr.mxu0 0.0
    %199 = vmatpush1.xpose.msra.mxu0 0.0
    %200 = vmatprep.subr.mxu0 0.0
    %201 = vmatpush1.xpose.msra.mxu0 0.0
    %202 = vmatprep.subr.mxu0 0.0
    %203 = vmatpush1.xpose.msra.mxu0 0.0
    %204 = vmatprep.subr.mxu0 0.0
    %205 = vmatpush1.xpose.msra.mxu0 0.0
    %206 = vmatprep.subr.mxu0 0.0
    %207 = vmatpush1.xpose.msra.mxu0 0.0
    %208 = vmatprep.subr.mxu0 0.0
    %209 = vmatpush1.xpose.msra.mxu0 0.0
    %210 = vmatprep.subr.mxu0 0.0
    %211 = vmatpush1.xpose.msra.mxu0 0.0
    %212 = vmatprep.subr.mxu0 0.0
    %213 = vmatpush1.xpose.msra.mxu0 0.0
    %214 = vmatprep.subr.mxu0 0.0
    %215 = vmatpush1.xpose.msra.mxu0 0.0
    %216 = vmatprep.subr.mxu0 0.0
    %217 = vmatpush1.xpose.msra.mxu0 0.0
    %218 = vmatprep.subr.mxu0 0.0
    %219 = vmatpush1.xpose.msra.mxu0 0.0
    %220 = vmatprep.subr.mxu0 0.0
    %221 = vmatpush1.xpose.msra.mxu0 0.0
    %222 = vmatprep.subr.mxu0 0.0
    %223 = vmatpush1.xpose.msra.mxu0 0.0
    %224 = vmatprep.subr.mxu0 0.0
    %225 = vmatpush1.xpose.msra.mxu0 0.0
    %226 = vmatprep.subr.mxu0 0.0
    %227 = vmatpush1.xpose.msra.mxu0 0.0
    %228 = vmatprep.subr.mxu0 0.0
    %229 = vmatpush1.xpose.msra.mxu0 0.0
    %230 = vmatprep.mubr.f32.mxu0 0.0
    %231 = vmatmul.mubr.f32.gmra.mrb[0].mxu0 %v162
    %v232 = vpop.f32.mrb[0].mxu0
    %v233 = vadd.f32 0.0, %v232
    %v234 = vpop.f32.mrb[0].mxu0
    %235 = vdwg.mxu0
    %236 = vrot.lane.b32.xlu0 %v140, 96
    %v237 = vpop.permute.xlu0 %236
    %v238 = vsel %vm161, %v140, 0
    %v240 = vsel %vm161, %v237, 0
    %242 = vmatprep.subr.mxu0 0.0
    %243 = vmatpush1.xpose.msra.mxu0 %v240
    %244 = vmatprep.subr.mxu0 0.0
    %245 = vmatpush1.xpose.msra.mxu0 0.0
    %246 = vmatprep.subr.mxu0 0.0
    %247 = vmatpush1.xpose.msra.mxu0 0.0
    %248 = vmatprep.subr.mxu0 0.0
    %249 = vmatpush1.xpose.msra.mxu0 0.0
    %250 = vmatprep.subr.mxu0 0.0
    %251 = vmatpush1.xpose.msra.mxu0 0.0
    %252 = vmatprep.subr.mxu0 0.0
    %253 = vmatpush1.xpose.msra.mxu0 0.0
    %254 = vmatprep.subr.mxu0 0.0
    %255 = vmatpush1.xpose.msra.mxu0 0.0
    %256 = vmatprep.subr.mxu0 0.0
    %257 = vmatpush1.xpose.msra.mxu0 0.0
    %258 = vmatprep.subr.mxu0 0.0
    %259 = vmatpush1.xpose.msra.mxu0 0.0
    %260 = vmatprep.subr.mxu0 0.0
    %261 = vmatpush1.xpose.msra.mxu0 0.0
    %262 = vmatprep.subr.mxu0 0.0
    %263 = vmatpush1.xpose.msra.mxu0 0.0
    %264 = vmatprep.subr.mxu0 0.0
    %265 = vmatpush1.xpose.msra.mxu0 0.0
    %266 = vmatprep.subr.mxu0 0.0
    %267 = vmatpush1.xpose.msra.mxu0 0.0
    %268 = vmatprep.subr.mxu0 0.0
    %269 = vmatpush1.xpose.msra.mxu0 0.0
    %270 = vmatprep.subr.mxu0 0.0
    %271 = vmatpush1.xpose.msra.mxu0 0.0
    %272 = vmatprep.subr.mxu0 0.0
    %273 = vmatpush1.xpose.msra.mxu0 0.0
    %274 = vmatprep.subr.mxu0 0.0
    %275 = vmatpush1.xpose.msra.mxu0 0.0
    %276 = vmatprep.subr.mxu0 0.0
    %277 = vmatpush1.xpose.msra.mxu0 0.0
    %278 = vmatprep.subr.mxu0 0.0
    %279 = vmatpush1.xpose.msra.mxu0 0.0
    %280 = vmatprep.subr.mxu0 0.0
    %281 = vmatpush1.xpose.msra.mxu0 0.0
    %282 = vmatprep.subr.mxu0 0.0
    %283 = vmatpush1.xpose.msra.mxu0 0.0
    %284 = vmatprep.subr.mxu0 0.0
    %285 = vmatpush1.xpose.msra.mxu0 0.0
    %286 = vmatprep.subr.mxu0 0.0
    %287 = vmatpush1.xpose.msra.mxu0 0.0
    %288 = vmatprep.subr.mxu0 0.0
    %289 = vmatpush1.xpose.msra.mxu0 0.0
    %290 = vmatprep.subr.mxu0 0.0
    %291 = vmatpush1.xpose.msra.mxu0 0.0
    %292 = vmatprep.subr.mxu0 0.0
    %293 = vmatpush1.xpose.msra.mxu0 0.0
    %294 = vmatprep.subr.mxu0 0.0
    %295 = vmatpush1.xpose.msra.mxu0 0.0
    %296 = vmatprep.subr.mxu0 0.0
    %297 = vmatpush1.xpose.msra.mxu0 0.0
    %298 = vmatprep.subr.mxu0 0.0
    %299 = vmatpush1.xpose.msra.mxu0 0.0
    %300 = vmatprep.subr.mxu0 0.0
    %301 = vmatpush1.xpose.msra.mxu0 0.0
    %302 = vmatprep.subr.mxu0 0.0
    %303 = vmatpush1.xpose.msra.mxu0 0.0
    %304 = vmatprep.subr.mxu0 0.0
    %305 = vmatpush1.xpose.msra.mxu0 0.0
    %306 = vmatprep.mubr.f32.mxu0 0.0
    %307 = vmatmul.mubr.f32.gmra.mrb[0].mxu0 %v238
    %v308 = vpop.f32.mrb[0].mxu0
    %v309 = vadd.f32 0.0, %v308
    %v310 = vpop.f32.mrb[0].mxu0
    %311 = vdwg.mxu0
    %312 = vrot.lane.b32.xlu0 %v146, 96
    %v313 = vpop.permute.xlu0 %312
    %v314 = vsel %vm161, %v146, 0
    %v316 = vsel %vm161, %v313, 0
    %318 = vmatprep.subr.mxu0 0.0
    %319 = vmatpush1.xpose.msra.mxu0 %v316
    %320 = vmatprep.subr.mxu0 0.0
    %321 = vmatpush1.xpose.msra.mxu0 0.0
    %322 = vmatprep.subr.mxu0 0.0
    %323 = vmatpush1.xpose.msra.mxu0 0.0
    %324 = vmatprep.subr.mxu0 0.0
    %325 = vmatpush1.xpose.msra.mxu0 0.0
    %326 = vmatprep.subr.mxu0 0.0
    %327 = vmatpush1.xpose.msra.mxu0 0.0
    %328 = vmatprep.subr.mxu0 0.0
    %329 = vmatpush1.xpose.msra.mxu0 0.0
    %330 = vmatprep.subr.mxu0 0.0
    %331 = vmatpush1.xpose.msra.mxu0 0.0
    %332 = vmatprep.subr.mxu0 0.0
    %333 = vmatpush1.xpose.msra.mxu0 0.0
    %334 = vmatprep.subr.mxu0 0.0
    %335 = vmatpush1.xpose.msra.mxu0 0.0
    %336 = vmatprep.subr.mxu0 0.0
    %337 = vmatpush1.xpose.msra.mxu0 0.0
    %338 = vmatprep.subr.mxu0 0.0
    %339 = vmatpush1.xpose.msra.mxu0 0.0
    %340 = vmatprep.subr.mxu0 0.0
    %341 = vmatpush1.xpose.msra.mxu0 0.0
    %342 = vmatprep.subr.mxu0 0.0
    %343 = vmatpush1.xpose.msra.mxu0 0.0
    %344 = vmatprep.subr.mxu0 0.0
    %345 = vmatpush1.xpose.msra.mxu0 0.0
    %346 = vmatprep.subr.mxu0 0.0
    %347 = vmatpush1.xpose.msra.mxu0 0.0
    %348 = vmatprep.subr.mxu0 0.0
    %349 = vmatpush1.xpose.msra.mxu0 0.0
    %350 = vmatprep.subr.mxu0 0.0
    %351 = vmatpush1.xpose.msra.mxu0 0.0
    %352 = vmatprep.subr.mxu0 0.0
    %353 = vmatpush1.xpose.msra.mxu0 0.0
    %354 = vmatprep.subr.mxu0 0.0
    %355 = vmatpush1.xpose.msra.mxu0 0.0
    %356 = vmatprep.subr.mxu0 0.0
    %357 = vmatpush1.xpose.msra.mxu0 0.0
    %358 = vmatprep.subr.mxu0 0.0
    %359 = vmatpush1.xpose.msra.mxu0 0.0
    %360 = vmatprep.subr.mxu0 0.0
    %361 = vmatpush1.xpose.msra.mxu0 0.0
    %362 = vmatprep.subr.mxu0 0.0
    %363 = vmatpush1.xpose.msra.mxu0 0.0
    %364 = vmatprep.subr.mxu0 0.0
    %365 = vmatpush1.xpose.msra.mxu0 0.0
    %366 = vmatprep.subr.mxu0 0.0
    %367 = vmatpush1.xpose.msra.mxu0 0.0
    %368 = vmatprep.subr.mxu0 0.0
    %369 = vmatpush1.xpose.msra.mxu0 0.0
    %370 = vmatprep.subr.mxu0 0.0
    %371 = vmatpush1.xpose.msra.mxu0 0.0
    %372 = vmatprep.subr.mxu0 0.0
    %373 = vmatpush1.xpose.msra.mxu0 0.0
    %374 = vmatprep.subr.mxu0 0.0
    %375 = vmatpush1.xpose.msra.mxu0 0.0
    %376 = vmatprep.subr.mxu0 0.0
    %377 = vmatpush1.xpose.msra.mxu0 0.0
    %378 = vmatprep.subr.mxu0 0.0
    %379 = vmatpush1.xpose.msra.mxu0 0.0
    %380 = vmatprep.subr.mxu0 0.0
    %381 = vmatpush1.xpose.msra.mxu0 0.0
    %382 = vmatprep.mubr.f32.mxu0 0.0
    %383 = vmatmul.mubr.f32.gmra.mrb[0].mxu0 %v314
    %v384 = vpop.f32.mrb[0].mxu0
    %v385 = vadd.f32 0.0, %v384
    %v386 = vpop.f32.mrb[0].mxu0
    %387 = vdwg.mxu0
    %388 = vrot.lane.b32.xlu0 %v148, 96
    %v389 = vpop.permute.xlu0 %388
    %v390 = vsel %vm161, %v148, 0
    %v392 = vsel %vm161, %v389, 0
    %394 = vmatprep.subr.mxu0 0.0
    %395 = vmatpush1.xpose.msra.mxu0 %v392
    %396 = vmatprep.subr.mxu0 0.0
    %397 = vmatpush1.xpose.msra.mxu0 0.0
    %398 = vmatprep.subr.mxu0 0.0
    %399 = vmatpush1.xpose.msra.mxu0 0.0
    %400 = vmatprep.subr.mxu0 0.0
    %401 = vmatpush1.xpose.msra.mxu0 0.0
    %402 = vmatprep.subr.mxu0 0.0
    %403 = vmatpush1.xpose.msra.mxu0 0.0
    %404 = vmatprep.subr.mxu0 0.0
    %405 = vmatpush1.xpose.msra.mxu0 0.0
    %406 = vmatprep.subr.mxu0 0.0
    %407 = vmatpush1.xpose.msra.mxu0 0.0
    %408 = vmatprep.subr.mxu0 0.0
    %409 = vmatpush1.xpose.msra.mxu0 0.0
    %410 = vmatprep.subr.mxu0 0.0
    %411 = vmatpush1.xpose.msra.mxu0 0.0
    %412 = vmatprep.subr.mxu0 0.0
    %413 = vmatpush1.xpose.msra.mxu0 0.0
    %414 = vmatprep.subr.mxu0 0.0
    %415 = vmatpush1.xpose.msra.mxu0 0.0
    %416 = vmatprep.subr.mxu0 0.0
    %417 = vmatpush1.xpose.msra.mxu0 0.0
    %418 = vmatprep.subr.mxu0 0.0
    %419 = vmatpush1.xpose.msra.mxu0 0.0
    %420 = vmatprep.subr.mxu0 0.0
    %421 = vmatpush1.xpose.msra.mxu0 0.0
    %422 = vmatprep.subr.mxu0 0.0
    %423 = vmatpush1.xpose.msra.mxu0 0.0
    %424 = vmatprep.subr.mxu0 0.0
    %425 = vmatpush1.xpose.msra.mxu0 0.0
    %426 = vmatprep.subr.mxu0 0.0
    %427 = vmatpush1.xpose.msra.mxu0 0.0
    %428 = vmatprep.subr.mxu0 0.0
    %429 = vmatpush1.xpose.msra.mxu0 0.0
    %430 = vmatprep.subr.mxu0 0.0
    %431 = vmatpush1.xpose.msra.mxu0 0.0
    %432 = vmatprep.subr.mxu0 0.0
    %433 = vmatpush1.xpose.msra.mxu0 0.0
    %434 = vmatprep.subr.mxu0 0.0
    %435 = vmatpush1.xpose.msra.mxu0 0.0
    %436 = vmatprep.subr.mxu0 0.0
    %437 = vmatpush1.xpose.msra.mxu0 0.0
    %438 = vmatprep.subr.mxu0 0.0
    %439 = vmatpush1.xpose.msra.mxu0 0.0
    %440 = vmatprep.subr.mxu0 0.0
    %441 = vmatpush1.xpose.msra.mxu0 0.0
    %442 = vmatprep.subr.mxu0 0.0
    %443 = vmatpush1.xpose.msra.mxu0 0.0
    %444 = vmatprep.subr.mxu0 0.0
    %445 = vmatpush1.xpose.msra.mxu0 0.0
    %446 = vmatprep.subr.mxu0 0.0
    %447 = vmatpush1.xpose.msra.mxu0 0.0
    %448 = vmatprep.subr.mxu0 0.0
    %449 = vmatpush1.xpose.msra.mxu0 0.0
    %450 = vmatprep.subr.mxu0 0.0
    %451 = vmatpush1.xpose.msra.mxu0 0.0
    %452 = vmatprep.subr.mxu0 0.0
    %453 = vmatpush1.xpose.msra.mxu0 0.0
    %454 = vmatprep.subr.mxu0 0.0
    %455 = vmatpush1.xpose.msra.mxu0 0.0
    %456 = vmatprep.subr.mxu0 0.0
    %457 = vmatpush1.xpose.msra.mxu0 0.0
    %458 = vmatprep.mubr.f32.mxu0 0.0
    %459 = vmatmul.mubr.f32.gmra.mrb[0].mxu0 %v390
    %v460 = vpop.f32.mrb[0].mxu0
    %v461 = vadd.f32 0.0, %v460
    %v462 = vpop.f32.mrb[0].mxu0
    %463 = vdwg.mxu0
    %464 = vrot.lane.b32.xlu0 %v150, 96
    %v465 = vpop.permute.xlu0 %464
    %v466 = vsel %vm161, %v150, 0
    %v468 = vsel %vm161, %v465, 0
    %470 = vmatprep.subr.mxu0 0.0
    %471 = vmatpush1.xpose.msra.mxu0 %v468
    %472 = vmatprep.subr.mxu0 0.0
    %473 = vmatpush1.xpose.msra.mxu0 0.0
    %474 = vmatprep.subr.mxu0 0.0
    %475 = vmatpush1.xpose.msra.mxu0 0.0
    %476 = vmatprep.subr.mxu0 0.0
    %477 = vmatpush1.xpose.msra.mxu0 0.0
    %478 = vmatprep.subr.mxu0 0.0
    %479 = vmatpush1.xpose.msra.mxu0 0.0
    %480 = vmatprep.subr.mxu0 0.0
    %481 = vmatpush1.xpose.msra.mxu0 0.0
    %482 = vmatprep.subr.mxu0 0.0
    %483 = vmatpush1.xpose.msra.mxu0 0.0
    %484 = vmatprep.subr.mxu0 0.0
    %485 = vmatpush1.xpose.msra.mxu0 0.0
    %486 = vmatprep.subr.mxu0 0.0
    %487 = vmatpush1.xpose.msra.mxu0 0.0
    %488 = vmatprep.subr.mxu0 0.0
    %489 = vmatpush1.xpose.msra.mxu0 0.0
    %490 = vmatprep.subr.mxu0 0.0
    %491 = vmatpush1.xpose.msra.mxu0 0.0
    %492 = vmatprep.subr.mxu0 0.0
    %493 = vmatpush1.xpose.msra.mxu0 0.0
    %494 = vmatprep.subr.mxu0 0.0
    %495 = vmatpush1.xpose.msra.mxu0 0.0
    %496 = vmatprep.subr.mxu0 0.0
    %497 = vmatpush1.xpose.msra.mxu0 0.0
    %498 = vmatprep.subr.mxu0 0.0
    %499 = vmatpush1.xpose.msra.mxu0 0.0
    %500 = vmatprep.subr.mxu0 0.0
    %501 = vmatpush1.xpose.msra.mxu0 0.0
    %502 = vmatprep.subr.mxu0 0.0
    %503 = vmatpush1.xpose.msra.mxu0 0.0
    %504 = vmatprep.subr.mxu0 0.0
    %505 = vmatpush1.xpose.msra.mxu0 0.0
    %506 = vmatprep.subr.mxu0 0.0
    %507 = vmatpush1.xpose.msra.mxu0 0.0
    %508 = vmatprep.subr.mxu0 0.0
    %509 = vmatpush1.xpose.msra.mxu0 0.0
    %510 = vmatprep.subr.mxu0 0.0
    %511 = vmatpush1.xpose.msra.mxu0 0.0
    %512 = vmatprep.subr.mxu0 0.0
    %513 = vmatpush1.xpose.msra.mxu0 0.0
    %514 = vmatprep.subr.mxu0 0.0
    %515 = vmatpush1.xpose.msra.mxu0 0.0
    %516 = vmatprep.subr.mxu0 0.0
    %517 = vmatpush1.xpose.msra.mxu0 0.0
    %518 = vmatprep.subr.mxu0 0.0
    %519 = vmatpush1.xpose.msra.mxu0 0.0
    %520 = vmatprep.subr.mxu0 0.0
    %521 = vmatpush1.xpose.msra.mxu0 0.0
    %522 = vmatprep.subr.mxu0 0.0
    %523 = vmatpush1.xpose.msra.mxu0 0.0
    %524 = vmatprep.subr.mxu0 0.0
    %525 = vmatpush1.xpose.msra.mxu0 0.0
    %526 = vmatprep.subr.mxu0 0.0
    %527 = vmatpush1.xpose.msra.mxu0 0.0
    %528 = vmatprep.subr.mxu0 0.0
    %529 = vmatpush1.xpose.msra.mxu0 0.0
    %530 = vmatprep.subr.mxu0 0.0
    %531 = vmatpush1.xpose.msra.mxu0 0.0
    %532 = vmatprep.subr.mxu0 0.0
    %533 = vmatpush1.xpose.msra.mxu0 0.0
    %534 = vmatprep.mubr.f32.mxu0 0.0
    %535 = vmatmul.mubr.f32.gmra.mrb[0].mxu0 %v466
    %v536 = vpop.f32.mrb[0].mxu0
    %v537 = vadd.f32 0.0, %v536
    %v538 = vpop.f32.mrb[0].mxu0
    %539 = vdwg.mxu0
    %540 = vrot.lane.b32.xlu0 %v152, 96
    %v541 = vpop.permute.xlu0 %540
    %v542 = vsel %vm161, %v152, 0
    %v544 = vsel %vm161, %v541, 0
    %546 = vmatprep.subr.mxu0 0.0
    %547 = vmatpush1.xpose.msra.mxu0 %v544
    %548 = vmatprep.subr.mxu0 0.0
    %549 = vmatpush1.xpose.msra.mxu0 0.0
    %550 = vmatprep.subr.mxu0 0.0
    %551 = vmatpush1.xpose.msra.mxu0 0.0
    %552 = vmatprep.subr.mxu0 0.0
    %553 = vmatpush1.xpose.msra.mxu0 0.0
    %554 = vmatprep.subr.mxu0 0.0
    %555 = vmatpush1.xpose.msra.mxu0 0.0
    %556 = vmatprep.subr.mxu0 0.0
    %557 = vmatpush1.xpose.msra.mxu0 0.0
    %558 = vmatprep.subr.mxu0 0.0
    %559 = vmatpush1.xpose.msra.mxu0 0.0
    %560 = vmatprep.subr.mxu0 0.0
    %561 = vmatpush1.xpose.msra.mxu0 0.0
    %562 = vmatprep.subr.mxu0 0.0
    %563 = vmatpush1.xpose.msra.mxu0 0.0
    %564 = vmatprep.subr.mxu0 0.0
    %565 = vmatpush1.xpose.msra.mxu0 0.0
    %566 = vmatprep.subr.mxu0 0.0
    %567 = vmatpush1.xpose.msra.mxu0 0.0
    %568 = vmatprep.subr.mxu0 0.0
    %569 = vmatpush1.xpose.msra.mxu0 0.0
    %570 = vmatprep.subr.mxu0 0.0
    %571 = vmatpush1.xpose.msra.mxu0 0.0
    %572 = vmatprep.subr.mxu0 0.0
    %573 = vmatpush1.xpose.msra.mxu0 0.0
    %574 = vmatprep.subr.mxu0 0.0
    %575 = vmatpush1.xpose.msra.mxu0 0.0
    %576 = vmatprep.subr.mxu0 0.0
    %577 = vmatpush1.xpose.msra.mxu0 0.0
    %578 = vmatprep.subr.mxu0 0.0
    %579 = vmatpush1.xpose.msra.mxu0 0.0
    %580 = vmatprep.subr.mxu0 0.0
    %581 = vmatpush1.xpose.msra.mxu0 0.0
    %582 = vmatprep.subr.mxu0 0.0
    %583 = vmatpush1.xpose.msra.mxu0 0.0
    %584 = vmatprep.subr.mxu0 0.0
    %585 = vmatpush1.xpose.msra.mxu0 0.0
    %586 = vmatprep.subr.mxu0 0.0
    %587 = vmatpush1.xpose.msra.mxu0 0.0
    %588 = vmatprep.subr.mxu0 0.0
    %589 = vmatpush1.xpose.msra.mxu0 0.0
    %590 = vmatprep.subr.mxu0 0.0
    %591 = vmatpush1.xpose.msra.mxu0 0.0
    %592 = vmatprep.subr.mxu0 0.0
    %593 = vmatpush1.xpose.msra.mxu0 0.0
    %594 = vmatprep.subr.mxu0 0.0
    %595 = vmatpush1.xpose.msra.mxu0 0.0
    %596 = vmatprep.subr.mxu0 0.0
    %597 = vmatpush1.xpose.msra.mxu0 0.0
    %598 = vmatprep.subr.mxu0 0.0
    %599 = vmatpush1.xpose.msra.mxu0 0.0
    %600 = vmatprep.subr.mxu0 0.0
    %601 = vmatpush1.xpose.msra.mxu0 0.0
    %602 = vmatprep.subr.mxu0 0.0
    %603 = vmatpush1.xpose.msra.mxu0 0.0
    %604 = vmatprep.subr.mxu0 0.0
    %605 = vmatpush1.xpose.msra.mxu0 0.0
    %606 = vmatprep.subr.mxu0 0.0
    %607 = vmatpush1.xpose.msra.mxu0 0.0
    %608 = vmatprep.subr.mxu0 0.0
    %609 = vmatpush1.xpose.msra.mxu0 0.0
    %610 = vmatprep.mubr.f32.mxu0 0.0
    %611 = vmatmul.mubr.f32.gmra.mrb[0].mxu0 %v542
    %v612 = vpop.f32.mrb[0].mxu0
    %v613 = vadd.f32 0.0, %v612
    %v614 = vpop.f32.mrb[0].mxu0
    %615 = vdwg.mxu0
    %616 = vrot.lane.b32.xlu0 %v154, 96
    %v617 = vpop.permute.xlu0 %616
    %v618 = vsel %vm161, %v154, 0
    %v620 = vsel %vm161, %v617, 0
    %622 = vmatprep.subr.mxu0 0.0
    %623 = vmatpush1.xpose.msra.mxu0 %v620
    %624 = vmatprep.subr.mxu0 0.0
    %625 = vmatpush1.xpose.msra.mxu0 0.0
    %626 = vmatprep.subr.mxu0 0.0
    %627 = vmatpush1.xpose.msra.mxu0 0.0
    %628 = vmatprep.subr.mxu0 0.0
    %629 = vmatpush1.xpose.msra.mxu0 0.0
    %630 = vmatprep.subr.mxu0 0.0
    %631 = vmatpush1.xpose.msra.mxu0 0.0
    %632 = vmatprep.subr.mxu0 0.0
    %633 = vmatpush1.xpose.msra.mxu0 0.0
    %634 = vmatprep.subr.mxu0 0.0
    %635 = vmatpush1.xpose.msra.mxu0 0.0
    %636 = vmatprep.subr.mxu0 0.0
    %637 = vmatpush1.xpose.msra.mxu0 0.0
    %638 = vmatprep.subr.mxu0 0.0
    %639 = vmatpush1.xpose.msra.mxu0 0.0
    %640 = vmatprep.subr.mxu0 0.0
    %641 = vmatpush1.xpose.msra.mxu0 0.0
    %642 = vmatprep.subr.mxu0 0.0
    %643 = vmatpush1.xpose.msra.mxu0 0.0
    %644 = vmatprep.subr.mxu0 0.0
    %645 = vmatpush1.xpose.msra.mxu0 0.0
    %646 = vmatprep.subr.mxu0 0.0
    %647 = vmatpush1.xpose.msra.mxu0 0.0
    %648 = vmatprep.subr.mxu0 0.0
    %649 = vmatpush1.xpose.msra.mxu0 0.0
    %650 = vmatprep.subr.mxu0 0.0
    %651 = vmatpush1.xpose.msra.mxu0 0.0
    %652 = vmatprep.subr.mxu0 0.0
    %653 = vmatpush1.xpose.msra.mxu0 0.0
    %654 = vmatprep.subr.mxu0 0.0
    %655 = vmatpush1.xpose.msra.mxu0 0.0
    %656 = vmatprep.subr.mxu0 0.0
    %657 = vmatpush1.xpose.msra.mxu0 0.0
    %658 = vmatprep.subr.mxu0 0.0
    %659 = vmatpush1.xpose.msra.mxu0 0.0
    %660 = vmatprep.subr.mxu0 0.0
    %661 = vmatpush1.xpose.msra.mxu0 0.0
    %662 = vmatprep.subr.mxu0 0.0
    %663 = vmatpush1.xpose.msra.mxu0 0.0
    %664 = vmatprep.subr.mxu0 0.0
    %665 = vmatpush1.xpose.msra.mxu0 0.0
    %666 = vmatprep.subr.mxu0 0.0
    %667 = vmatpush1.xpose.msra.mxu0 0.0
    %668 = vmatprep.subr.mxu0 0.0
    %669 = vmatpush1.xpose.msra.mxu0 0.0
    %670 = vmatprep.subr.mxu0 0.0
    %671 = vmatpush1.xpose.msra.mxu0 0.0
    %672 = vmatprep.subr.mxu0 0.0
    %673 = vmatpush1.xpose.msra.mxu0 0.0
    %674 = vmatprep.subr.mxu0 0.0
    %675 = vmatpush1.xpose.msra.mxu0 0.0
    %676 = vmatprep.subr.mxu0 0.0
    %677 = vmatpush1.xpose.msra.mxu0 0.0
    %678 = vmatprep.subr.mxu0 0.0
    %679 = vmatpush1.xpose.msra.mxu0 0.0
    %680 = vmatprep.subr.mxu0 0.0
    %681 = vmatpush1.xpose.msra.mxu0 0.0
    %682 = vmatprep.subr.mxu0 0.0
    %683 = vmatpush1.xpose.msra.mxu0 0.0
    %684 = vmatprep.subr.mxu0 0.0
    %685 = vmatpush1.xpose.msra.mxu0 0.0
    %686 = vmatprep.mubr.f32.mxu0 0.0
    %687 = vmatmul.mubr.f32.gmra.mrb[0].mxu0 %v618
    %v688 = vpop.f32.mrb[0].mxu0
    %v689 = vadd.f32 0.0, %v688
    %v690 = vpop.f32.mrb[0].mxu0
    %691 = vdwg.mxu0
    %692 = vrot.lane.b32.xlu0 %v156, 96
    %v693 = vpop.permute.xlu0 %692
    %v694 = vsel %vm161, %v156, 0
    %v696 = vsel %vm161, %v693, 0
    %698 = vmatprep.subr.mxu0 0.0
    %699 = vmatpush1.xpose.msra.mxu0 %v696
    %700 = vmatprep.subr.mxu0 0.0
    %701 = vmatpush1.xpose.msra.mxu0 0.0
    %702 = vmatprep.subr.mxu0 0.0
    %703 = vmatpush1.xpose.msra.mxu0 0.0
    %704 = vmatprep.subr.mxu0 0.0
    %705 = vmatpush1.xpose.msra.mxu0 0.0
    %706 = vmatprep.subr.mxu0 0.0
    %707 = vmatpush1.xpose.msra.mxu0 0.0
    %708 = vmatprep.subr.mxu0 0.0
    %709 = vmatpush1.xpose.msra.mxu0 0.0
    %710 = vmatprep.subr.mxu0 0.0
    %711 = vmatpush1.xpose.msra.mxu0 0.0
    %712 = vmatprep.subr.mxu0 0.0
    %713 = vmatpush1.xpose.msra.mxu0 0.0
    %714 = vmatprep.subr.mxu0 0.0
    %715 = vmatpush1.xpose.msra.mxu0 0.0
    %716 = vmatprep.subr.mxu0 0.0
    %717 = vmatpush1.xpose.msra.mxu0 0.0
    %718 = vmatprep.subr.mxu0 0.0
    %719 = vmatpush1.xpose.msra.mxu0 0.0
    %720 = vmatprep.subr.mxu0 0.0
    %721 = vmatpush1.xpose.msra.mxu0 0.0
    %722 = vmatprep.subr.mxu0 0.0
    %723 = vmatpush1.xpose.msra.mxu0 0.0
    %724 = vmatprep.subr.mxu0 0.0
    %725 = vmatpush1.xpose.msra.mxu0 0.0
    %726 = vmatprep.subr.mxu0 0.0
    %727 = vmatpush1.xpose.msra.mxu0 0.0
    %728 = vmatprep.subr.mxu0 0.0
    %729 = vmatpush1.xpose.msra.mxu0 0.0
    %730 = vmatprep.subr.mxu0 0.0
    %731 = vmatpush1.xpose.msra.mxu0 0.0
    %732 = vmatprep.subr.mxu0 0.0
    %733 = vmatpush1.xpose.msra.mxu0 0.0
    %734 = vmatprep.subr.mxu0 0.0
    %735 = vmatpush1.xpose.msra.mxu0 0.0
    %736 = vmatprep.subr.mxu0 0.0
    %737 = vmatpush1.xpose.msra.mxu0 0.0
    %738 = vmatprep.subr.mxu0 0.0
    %739 = vmatpush1.xpose.msra.mxu0 0.0
    %740 = vmatprep.subr.mxu0 0.0
    %741 = vmatpush1.xpose.msra.mxu0 0.0
    %742 = vmatprep.subr.mxu0 0.0
    %743 = vmatpush1.xpose.msra.mxu0 0.0
    %744 = vmatprep.subr.mxu0 0.0
    %745 = vmatpush1.xpose.msra.mxu0 0.0
    %746 = vmatprep.subr.mxu0 0.0
    %747 = vmatpush1.xpose.msra.mxu0 0.0
    %748 = vmatprep.subr.mxu0 0.0
    %749 = vmatpush1.xpose.msra.mxu0 0.0
    %750 = vmatprep.subr.mxu0 0.0
    %751 = vmatpush1.xpose.msra.mxu0 0.0
    %752 = vmatprep.subr.mxu0 0.0
    %753 = vmatpush1.xpose.msra.mxu0 0.0
    %754 = vmatprep.subr.mxu0 0.0
    %755 = vmatpush1.xpose.msra.mxu0 0.0
    %756 = vmatprep.subr.mxu0 0.0
    %757 = vmatpush1.xpose.msra.mxu0 0.0
    %758 = vmatprep.subr.mxu0 0.0
    %759 = vmatpush1.xpose.msra.mxu0 0.0
    %760 = vmatprep.subr.mxu0 0.0
    %761 = vmatpush1.xpose.msra.mxu0 0.0
    %762 = vmatprep.mubr.f32.mxu0 0.0
    %763 = vmatmul.mubr.f32.gmra.mrb[0].mxu0 %v694
    %v764 = vpop.f32.mrb[0].mxu0
    %v765 = vadd.f32 0.0, %v764
    %v766 = vpop.f32.mrb[0].mxu0
    %767 = vdwg.mxu0
    %v768 = vmul.f32 %v233, 0.35355338
    %v769 = vmul.f32 %v309, 0.35355338
    %v770 = vmul.f32 %v385, 0.35355338
    %v771 = vmul.f32 %v461, 0.35355338
    %v772 = vmul.f32 %v537, 0.35355338
    %v773 = vmul.f32 %v613, 0.35355338
    %v774 = vmul.f32 %v689, 0.35355338
    %v775 = vmul.f32 %v765, 0.35355338
    %v778 = vlaneseq
    %v779 = vshrl.u32 %v778, 7
    %v780 = vsub.s32 0, %v779
    %v781 = vrot.slane %v157, %v780
    %v782 = vlaneseq
    %v783 = vshrl.u32 %v782, 7
    %v784 = vsub.s32 0, %v783
    %v785 = vrot.slane %v158, %v784
    %v788 = vadd.f32 %v768, %v781
    %v789 = vadd.f32 %v769, %v785
    %v790 = vadd.f32 %v770, %v781
    %v791 = vadd.f32 %v771, %v785
    %v792 = vadd.f32 %v772, %v781
    %v793 = vadd.f32 %v773, %v785
    %v794 = vadd.f32 %v774, %v781
    %v795 = vadd.f32 %v775, %v785
    %v796 = vsel %vm161, %v788, -inf
    %797 = vmax.xlane.f32.xlu0 %v796
    %v798 = vpop.xlane.xlu0 %797
    %v799 = vsel %vm161, %v789, -inf
    %800 = vmax.xlane.f32.xlu0 %v799
    %v801 = vpop.xlane.xlu0 %800
    %v802 = vsel %vm161, %v790, -inf
    %803 = vmax.xlane.f32.xlu0 %v802
    %v804 = vpop.xlane.xlu0 %803
    %v805 = vsel %vm161, %v791, -inf
    %806 = vmax.xlane.f32.xlu0 %v805
    %v807 = vpop.xlane.xlu0 %806
    %v808 = vsel %vm161, %v792, -inf
    %809 = vmax.xlane.f32.xlu0 %v808
    %v810 = vpop.xlane.xlu0 %809
    %v811 = vsel %vm161, %v793, -inf
    %812 = vmax.xlane.f32.xlu0 %v811
    %v813 = vpop.xlane.xlu0 %812
    %v814 = vsel %vm161, %v794, -inf
    %815 = vmax.xlane.f32.xlu0 %v814
    %v816 = vpop.xlane.xlu0 %815
    %v817 = vsel %vm161, %v795, -inf
    %818 = vmax.xlane.f32.xlu0 %v817
    %v819 = vpop.xlane.xlu0 %818
    %v820 = vsub.f32 %v788, %v798
    %v821 = vsub.f32 %v789, %v801
    %v822 = vsub.f32 %v790, %v804
    %v823 = vsub.f32 %v791, %v807
    %v824 = vsub.f32 %v792, %v810
    %v825 = vsub.f32 %v793, %v813
    %v826 = vsub.f32 %v794, %v816
    %v827 = vsub.f32 %v795, %v819
    %v828 = vmul.f32 %v820, 1.442695
    %v829 = vpow.pop %v828
    %v830 = vmul.f32 %v821, 1.442695
    %v831 = vpow.pop %v830
    %v832 = vmul.f32 %v822, 1.442695
    %v833 = vpow.pop %v832
    %v834 = vmul.f32 %v823, 1.442695
    %v835 = vpow.pop %v834
    %v836 = vmul.f32 %v824, 1.442695
    %v837 = vpow.pop %v836
    %v838 = vmul.f32 %v825, 1.442695
    %v839 = vpow.pop %v838
    %v840 = vmul.f32 %v826, 1.442695
    %v841 = vpow.pop %v840
    %v842 = vmul.f32 %v827, 1.442695
    %v843 = vpow.pop %v842
    %v844 = vsel %vm161, %v829, 0.0
    %845 = vadd.xlane.f32.xlu0 %v844
    %v846 = vpop.xlane.xlu0 %845
    %v847 = vsel %vm161, %v831, 0.0
    %848 = vadd.xlane.f32.xlu0 %v847
    %v849 = vpop.xlane.xlu0 %848
    %v850 = vsel %vm161, %v833, 0.0
    %851 = vadd.xlane.f32.xlu0 %v850
    %v852 = vpop.xlane.xlu0 %851
    %v853 = vsel %vm161, %v835, 0.0
    %854 = vadd.xlane.f32.xlu0 %v853
    %v855 = vpop.xlane.xlu0 %854
    %v856 = vsel %vm161, %v837, 0.0
    %857 = vadd.xlane.f32.xlu0 %v856
    %v858 = vpop.xlane.xlu0 %857
    %v859 = vsel %vm161, %v839, 0.0
    %860 = vadd.xlane.f32.xlu0 %v859
    %v861 = vpop.xlane.xlu0 %860
    %v862 = vsel %vm161, %v841, 0.0
    %863 = vadd.xlane.f32.xlu0 %v862
    %v864 = vpop.xlane.xlu0 %863
    %v865 = vsel %vm161, %v843, 0.0
    %866 = vadd.xlane.f32.xlu0 %v865
    %v867 = vpop.xlane.xlu0 %866
    %v868 = vrcp.pop %v846
    %v869 = vrcp.pop %v849
    %v870 = vrcp.pop %v852
    %v871 = vrcp.pop %v855
    %v872 = vrcp.pop %v858
    %v873 = vrcp.pop %v861
    %v874 = vrcp.pop %v864
    %v875 = vrcp.pop %v867
    %v876 = vmul.f32 %v829, %v868
    %v877 = vmul.f32 %v831, %v869
    %v878 = vmul.f32 %v833, %v870
    %v879 = vmul.f32 %v835, %v871
    %v880 = vmul.f32 %v837, %v872
    %v881 = vmul.f32 %v839, %v873
    %v882 = vmul.f32 %v841, %v874
    %v883 = vmul.f32 %v843, %v875
    %884 = vrot.lane.b32.xlu0 %v135, 64
    %v885 = vpop.permute.xlu0 %884
    %v888 = vsel %vm161, %v876, 0
    %890 = vmatprep.subr.mxu0 0.0
    %891 = vmatpush1.msra.mxu0 %v885
    %892 = vmatprep.subr.mxu0 0.0
    %893 = vmatpush1.msra.mxu0 0.0
    %894 = vmatprep.subr.mxu0 0.0
    %895 = vmatpush1.msra.mxu0 0.0
    %896 = vmatprep.subr.mxu0 0.0
    %897 = vmatpush1.msra.mxu0 0.0
    %898 = vmatprep.subr.mxu0 0.0
    %899 = vmatpush1.msra.mxu0 0.0
    %900 = vmatprep.subr.mxu0 0.0
    %901 = vmatpush1.msra.mxu0 0.0
    %902 = vmatprep.subr.mxu0 0.0
    %903 = vmatpush1.msra.mxu0 0.0
    %904 = vmatprep.subr.mxu0 0.0
    %905 = vmatpush1.msra.mxu0 0.0
    %906 = vmatprep.subr.mxu0 0.0
    %907 = vmatpush1.msra.mxu0 0.0
    %908 = vmatprep.subr.mxu0 0.0
    %909 = vmatpush1.msra.mxu0 0.0
    %910 = vmatprep.subr.mxu0 0.0
    %911 = vmatpush1.msra.mxu0 0.0
    %912 = vmatprep.subr.mxu0 0.0
    %913 = vmatpush1.msra.mxu0 0.0
    %914 = vmatprep.subr.mxu0 0.0
    %915 = vmatpush1.msra.mxu0 0.0
    %916 = vmatprep.subr.mxu0 0.0
    %917 = vmatpush1.msra.mxu0 0.0
    %918 = vmatprep.subr.mxu0 0.0
    %919 = vmatpush1.msra.mxu0 0.0
    %920 = vmatprep.subr.mxu0 0.0
    %921 = vmatpush1.msra.mxu0 0.0
    %922 = vmatprep.subr.mxu0 0.0
    %923 = vmatpush1.msra.mxu0 0.0
    %924 = vmatprep.subr.mxu0 0.0
    %925 = vmatpush1.msra.mxu0 0.0
    %926 = vmatprep.subr.mxu0 0.0
    %927 = vmatpush1.msra.mxu0 0.0
    %928 = vmatprep.subr.mxu0 0.0
    %929 = vmatpush1.msra.mxu0 0.0
    %930 = vmatprep.subr.mxu0 0.0
    %931 = vmatpush1.msra.mxu0 0.0
    %932 = vmatprep.subr.mxu0 0.0
    %933 = vmatpush1.msra.mxu0 0.0
    %934 = vmatprep.subr.mxu0 0.0
    %935 = vmatpush1.msra.mxu0 0.0
    %936 = vmatprep.subr.mxu0 0.0
    %937 = vmatpush1.msra.mxu0 0.0
    %938 = vmatprep.subr.mxu0 0.0
    %939 = vmatpush1.msra.mxu0 0.0
    %940 = vmatprep.subr.mxu0 0.0
    %941 = vmatpush1.msra.mxu0 0.0
    %942 = vmatprep.subr.mxu0 0.0
    %943 = vmatpush1.msra.mxu0 0.0
    %944 = vmatprep.subr.mxu0 0.0
    %945 = vmatpush1.msra.mxu0 0.0
    %946 = vmatprep.subr.mxu0 0.0
    %947 = vmatpush1.msra.mxu0 0.0
    %948 = vmatprep.subr.mxu0 0.0
    %949 = vmatpush1.msra.mxu0 0.0
    %950 = vmatprep.subr.mxu0 0.0
    %951 = vmatpush1.msra.mxu0 0.0
    %952 = vmatprep.subr.mxu0 0.0
    %953 = vmatpush1.msra.mxu0 0.0
    %954 = vmatprep.mubr.f32.mxu0 0.0
    %955 = vmatmul.mubr.f32.gmra.mrb[0].mxu0 %v888
    %v956 = vpop.f32.mrb[0].mxu0
    %v957 = vadd.f32 0.0, %v956
    %v958 = vpop.f32.mrb[0].mxu0
    %959 = vdwg.mxu0
    %960 = vrot.lane.b32.xlu0 %v140, 64
    %v961 = vpop.permute.xlu0 %960
    %v964 = vsel %vm161, %v877, 0
    %966 = vmatprep.subr.mxu0 0.0
    %967 = vmatpush1.msra.mxu0 %v961
    %968 = vmatprep.subr.mxu0 0.0
    %969 = vmatpush1.msra.mxu0 0.0
    %970 = vmatprep.subr.mxu0 0.0
    %971 = vmatpush1.msra.mxu0 0.0
    %972 = vmatprep.subr.mxu0 0.0
    %973 = vmatpush1.msra.mxu0 0.0
    %974 = vmatprep.subr.mxu0 0.0
    %975 = vmatpush1.msra.mxu0 0.0
    %976 = vmatprep.subr.mxu0 0.0
    %977 = vmatpush1.msra.mxu0 0.0
    %978 = vmatprep.subr.mxu0 0.0
    %979 = vmatpush1.msra.mxu0 0.0
    %980 = vmatprep.subr.mxu0 0.0
    %981 = vmatpush1.msra.mxu0 0.0
    %982 = vmatprep.subr.mxu0 0.0
    %983 = vmatpush1.msra.mxu0 0.0
    %984 = vmatprep.subr.mxu0 0.0
    %985 = vmatpush1.msra.mxu0 0.0
    %986 = vmatprep.subr.mxu0 0.0
    %987 = vmatpush1.msra.mxu0 0.0
    %988 = vmatprep.subr.mxu0 0.0
    %989 = vmatpush1.msra.mxu0 0.0
    %990 = vmatprep.subr.mxu0 0.0
    %991 = vmatpush1.msra.mxu0 0.0
    %992 = vmatprep.subr.mxu0 0.0
    %993 = vmatpush1.msra.mxu0 0.0
    %994 = vmatprep.subr.mxu0 0.0
    %995 = vmatpush1.msra.mxu0 0.0
    %996 = vmatprep.subr.mxu0 0.0
    %997 = vmatpush1.msra.mxu0 0.0
    %998 = vmatprep.subr.mxu0 0.0
    %999 = vmatpush1.msra.mxu0 0.0
    %1000 = vmatprep.subr.mxu0 0.0
    %1001 = vmatpush1.msra.mxu0 0.0
    %1002 = vmatprep.subr.mxu0 0.0
    %1003 = vmatpush1.msra.mxu0 0.0
    %1004 = vmatprep.subr.mxu0 0.0
    %1005 = vmatpush1.msra.mxu0 0.0
    %1006 = vmatprep.subr.mxu0 0.0
    %1007 = vmatpush1.msra.mxu0 0.0
    %1008 = vmatprep.subr.mxu0 0.0
    %1009 = vmatpush1.msra.mxu0 0.0
    %1010 = vmatprep.subr.mxu0 0.0
    %1011 = vmatpush1.msra.mxu0 0.0
    %1012 = vmatprep.subr.mxu0 0.0
    %1013 = vmatpush1.msra.mxu0 0.0
    %1014 = vmatprep.subr.mxu0 0.0
    %1015 = vmatpush1.msra.mxu0 0.0
    %1016 = vmatprep.subr.mxu0 0.0
    %1017 = vmatpush1.msra.mxu0 0.0
    %1018 = vmatprep.subr.mxu0 0.0
    %1019 = vmatpush1.msra.mxu0 0.0
    %1020 = vmatprep.subr.mxu0 0.0
    %1021 = vmatpush1.msra.mxu0 0.0
    %1022 = vmatprep.subr.mxu0 0.0
    %1023 = vmatpush1.msra.mxu0 0.0
    %1024 = vmatprep.subr.mxu0 0.0
    %1025 = vmatpush1.msra.mxu0 0.0
    %1026 = vmatprep.subr.mxu0 0.0
    %1027 = vmatpush1.msra.mxu0 0.0
    %1028 = vmatprep.subr.mxu0 0.0
    %1029 = vmatpush1.msra.mxu0 0.0
    %1030 = vmatprep.mubr.f32.mxu0 0.0
    %1031 = vmatmul.mubr.f32.gmra.mrb[0].mxu0 %v964
    %v1032 = vpop.f32.mrb[0].mxu0
    %v1033 = vadd.f32 0.0, %v1032
    %v1034 = vpop.f32.mrb[0].mxu0
    %1035 = vdwg.mxu0
    %1036 = vrot.lane.b32.xlu0 %v146, 64
    %v1037 = vpop.permute.xlu0 %1036
    %v1040 = vsel %vm161, %v878, 0
    %1042 = vmatprep.subr.mxu0 0.0
    %1043 = vmatpush1.msra.mxu0 %v1037
    %1044 = vmatprep.subr.mxu0 0.0
    %1045 = vmatpush1.msra.mxu0 0.0
    %1046 = vmatprep.subr.mxu0 0.0
    %1047 = vmatpush1.msra.mxu0 0.0
    %1048 = vmatprep.subr.mxu0 0.0
    %1049 = vmatpush1.msra.mxu0 0.0
    %1050 = vmatprep.subr.mxu0 0.0
    %1051 = vmatpush1.msra.mxu0 0.0
    %1052 = vmatprep.subr.mxu0 0.0
    %1053 = vmatpush1.msra.mxu0 0.0
    %1054 = vmatprep.subr.mxu0 0.0
    %1055 = vmatpush1.msra.mxu0 0.0
    %1056 = vmatprep.subr.mxu0 0.0
    %1057 = vmatpush1.msra.mxu0 0.0
    %1058 = vmatprep.subr.mxu0 0.0
    %1059 = vmatpush1.msra.mxu0 0.0
    %1060 = vmatprep.subr.mxu0 0.0
    %1061 = vmatpush1.msra.mxu0 0.0
    %1062 = vmatprep.subr.mxu0 0.0
    %1063 = vmatpush1.msra.mxu0 0.0
    %1064 = vmatprep.subr.mxu0 0.0
    %1065 = vmatpush1.msra.mxu0 0.0
    %1066 = vmatprep.subr.mxu0 0.0
    %1067 = vmatpush1.msra.mxu0 0.0
    %1068 = vmatprep.subr.mxu0 0.0
    %1069 = vmatpush1.msra.mxu0 0.0
    %1070 = vmatprep.subr.mxu0 0.0
    %1071 = vmatpush1.msra.mxu0 0.0
    %1072 = vmatprep.subr.mxu0 0.0
    %1073 = vmatpush1.msra.mxu0 0.0
    %1074 = vmatprep.subr.mxu0 0.0
    %1075 = vmatpush1.msra.mxu0 0.0
    %1076 = vmatprep.subr.mxu0 0.0
    %1077 = vmatpush1.msra.mxu0 0.0
    %1078 = vmatprep.subr.mxu0 0.0
    %1079 = vmatpush1.msra.mxu0 0.0
    %1080 = vmatprep.subr.mxu0 0.0
    %1081 = vmatpush1.msra.mxu0 0.0
    %1082 = vmatprep.subr.mxu0 0.0
    %1083 = vmatpush1.msra.mxu0 0.0
    %1084 = vmatprep.subr.mxu0 0.0
    %1085 = vmatpush1.msra.mxu0 0.0
    %1086 = vmatprep.subr.mxu0 0.0
    %1087 = vmatpush1.msra.mxu0 0.0
    %1088 = vmatprep.subr.mxu0 0.0
    %1089 = vmatpush1.msra.mxu0 0.0
    %1090 = vmatprep.subr.mxu0 0.0
    %1091 = vmatpush1.msra.mxu0 0.0
    %1092 = vmatprep.subr.mxu0 0.0
    %1093 = vmatpush1.msra.mxu0 0.0
    %1094 = vmatprep.subr.mxu0 0.0
    %1095 = vmatpush1.msra.mxu0 0.0
    %1096 = vmatprep.subr.mxu0 0.0
    %1097 = vmatpush1.msra.mxu0 0.0
    %1098 = vmatprep.subr.mxu0 0.0
    %1099 = vmatpush1.msra.mxu0 0.0
    %1100 = vmatprep.subr.mxu0 0.0
    %1101 = vmatpush1.msra.mxu0 0.0
    %1102 = vmatprep.subr.mxu0 0.0
    %1103 = vmatpush1.msra.mxu0 0.0
    %1104 = vmatprep.subr.mxu0 0.0
    %1105 = vmatpush1.msra.mxu0 0.0
    %1106 = vmatprep.mubr.f32.mxu0 0.0
    %1107 = vmatmul.mubr.f32.gmra.mrb[0].mxu0 %v1040
    %v1108 = vpop.f32.mrb[0].mxu0
    %v1109 = vadd.f32 0.0, %v1108
    %v1110 = vpop.f32.mrb[0].mxu0
    %1111 = vdwg.mxu0
    %1112 = vrot.lane.b32.xlu0 %v148, 64
    %v1113 = vpop.permute.xlu0 %1112
    %v1116 = vsel %vm161, %v879, 0
    %1118 = vmatprep.subr.mxu0 0.0
    %1119 = vmatpush1.msra.mxu0 %v1113
    %1120 = vmatprep.subr.mxu0 0.0
    %1121 = vmatpush1.msra.mxu0 0.0
    %1122 = vmatprep.subr.mxu0 0.0
    %1123 = vmatpush1.msra.mxu0 0.0
    %1124 = vmatprep.subr.mxu0 0.0
    %1125 = vmatpush1.msra.mxu0 0.0
    %1126 = vmatprep.subr.mxu0 0.0
    %1127 = vmatpush1.msra.mxu0 0.0
    %1128 = vmatprep.subr.mxu0 0.0
    %1129 = vmatpush1.msra.mxu0 0.0
    %1130 = vmatprep.subr.mxu0 0.0
    %1131 = vmatpush1.msra.mxu0 0.0
    %1132 = vmatprep.subr.mxu0 0.0
    %1133 = vmatpush1.msra.mxu0 0.0
    %1134 = vmatprep.subr.mxu0 0.0
    %1135 = vmatpush1.msra.mxu0 0.0
    %1136 = vmatprep.subr.mxu0 0.0
    %1137 = vmatpush1.msra.mxu0 0.0
    %1138 = vmatprep.subr.mxu0 0.0
    %1139 = vmatpush1.msra.mxu0 0.0
    %1140 = vmatprep.subr.mxu0 0.0
    %1141 = vmatpush1.msra.mxu0 0.0
    %1142 = vmatprep.subr.mxu0 0.0
    %1143 = vmatpush1.msra.mxu0 0.0
    %1144 = vmatprep.subr.mxu0 0.0
    %1145 = vmatpush1.msra.mxu0 0.0
    %1146 = vmatprep.subr.mxu0 0.0
    %1147 = vmatpush1.msra.mxu0 0.0
    %1148 = vmatprep.subr.mxu0 0.0
    %1149 = vmatpush1.msra.mxu0 0.0
    %1150 = vmatprep.subr.mxu0 0.0
    %1151 = vmatpush1.msra.mxu0 0.0
    %1152 = vmatprep.subr.mxu0 0.0
    %1153 = vmatpush1.msra.mxu0 0.0
    %1154 = vmatprep.subr.mxu0 0.0
    %1155 = vmatpush1.msra.mxu0 0.0
    %1156 = vmatprep.subr.mxu0 0.0
    %1157 = vmatpush1.msra.mxu0 0.0
    %1158 = vmatprep.subr.mxu0 0.0
    %1159 = vmatpush1.msra.mxu0 0.0
    %1160 = vmatprep.subr.mxu0 0.0
    %1161 = vmatpush1.msra.mxu0 0.0
    %1162 = vmatprep.subr.mxu0 0.0
    %1163 = vmatpush1.msra.mxu0 0.0
    %1164 = vmatprep.subr.mxu0 0.0
    %1165 = vmatpush1.msra.mxu0 0.0
    %1166 = vmatprep.subr.mxu0 0.0
    %1167 = vmatpush1.msra.mxu0 0.0
    %1168 = vmatprep.subr.mxu0 0.0
    %1169 = vmatpush1.msra.mxu0 0.0
    %1170 = vmatprep.subr.mxu0 0.0
    %1171 = vmatpush1.msra.mxu0 0.0
    %1172 = vmatprep.subr.mxu0 0.0
    %1173 = vmatpush1.msra.mxu0 0.0
    %1174 = vmatprep.subr.mxu0 0.0
    %1175 = vmatpush1.msra.mxu0 0.0
    %1176 = vmatprep.subr.mxu0 0.0
    %1177 = vmatpush1.msra.mxu0 0.0
    %1178 = vmatprep.subr.mxu0 0.0
    %1179 = vmatpush1.msra.mxu0 0.0
    %1180 = vmatprep.subr.mxu0 0.0
    %1181 = vmatpush1.msra.mxu0 0.0
    %1182 = vmatprep.mubr.f32.mxu0 0.0
    %1183 = vmatmul.mubr.f32.gmra.mrb[0].mxu0 %v1116
    %v1184 = vpop.f32.mrb[0].mxu0
    %v1185 = vadd.f32 0.0, %v1184
    %v1186 = vpop.f32.mrb[0].mxu0
    %1187 = vdwg.mxu0
    %1188 = vrot.lane.b32.xlu0 %v150, 64
    %v1189 = vpop.permute.xlu0 %1188
    %v1192 = vsel %vm161, %v880, 0
    %1194 = vmatprep.subr.mxu0 0.0
    %1195 = vmatpush1.msra.mxu0 %v1189
    %1196 = vmatprep.subr.mxu0 0.0
    %1197 = vmatpush1.msra.mxu0 0.0
    %1198 = vmatprep.subr.mxu0 0.0
    %1199 = vmatpush1.msra.mxu0 0.0
    %1200 = vmatprep.subr.mxu0 0.0
    %1201 = vmatpush1.msra.mxu0 0.0
    %1202 = vmatprep.subr.mxu0 0.0
    %1203 = vmatpush1.msra.mxu0 0.0
    %1204 = vmatprep.subr.mxu0 0.0
    %1205 = vmatpush1.msra.mxu0 0.0
    %1206 = vmatprep.subr.mxu0 0.0
    %1207 = vmatpush1.msra.mxu0 0.0
    %1208 = vmatprep.subr.mxu0 0.0
    %1209 = vmatpush1.msra.mxu0 0.0
    %1210 = vmatprep.subr.mxu0 0.0
    %1211 = vmatpush1.msra.mxu0 0.0
    %1212 = vmatprep.subr.mxu0 0.0
    %1213 = vmatpush1.msra.mxu0 0.0
    %1214 = vmatprep.subr.mxu0 0.0
    %1215 = vmatpush1.msra.mxu0 0.0
    %1216 = vmatprep.subr.mxu0 0.0
    %1217 = vmatpush1.msra.mxu0 0.0
    %1218 = vmatprep.subr.mxu0 0.0
    %1219 = vmatpush1.msra.mxu0 0.0
    %1220 = vmatprep.subr.mxu0 0.0
    %1221 = vmatpush1.msra.mxu0 0.0
    %1222 = vmatprep.subr.mxu0 0.0
    %1223 = vmatpush1.msra.mxu0 0.0
    %1224 = vmatprep.subr.mxu0 0.0
    %1225 = vmatpush1.msra.mxu0 0.0
    %1226 = vmatprep.subr.mxu0 0.0
    %1227 = vmatpush1.msra.mxu0 0.0
    %1228 = vmatprep.subr.mxu0 0.0
    %1229 = vmatpush1.msra.mxu0 0.0
    %1230 = vmatprep.subr.mxu0 0.0
    %1231 = vmatpush1.msra.mxu0 0.0
    %1232 = vmatprep.subr.mxu0 0.0
    %1233 = vmatpush1.msra.mxu0 0.0
    %1234 = vmatprep.subr.mxu0 0.0
    %1235 = vmatpush1.msra.mxu0 0.0
    %1236 = vmatprep.subr.mxu0 0.0
    %1237 = vmatpush1.msra.mxu0 0.0
    %1238 = vmatprep.subr.mxu0 0.0
    %1239 = vmatpush1.msra.mxu0 0.0
    %1240 = vmatprep.subr.mxu0 0.0
    %1241 = vmatpush1.msra.mxu0 0.0
    %1242 = vmatprep.subr.mxu0 0.0
    %1243 = vmatpush1.msra.mxu0 0.0
    %1244 = vmatprep.subr.mxu0 0.0
    %1245 = vmatpush1.msra.mxu0 0.0
    %1246 = vmatprep.subr.mxu0 0.0
    %1247 = vmatpush1.msra.mxu0 0.0
    %1248 = vmatprep.subr.mxu0 0.0
    %1249 = vmatpush1.msra.mxu0 0.0
    %1250 = vmatprep.subr.mxu0 0.0
    %1251 = vmatpush1.msra.mxu0 0.0
    %1252 = vmatprep.subr.mxu0 0.0
    %1253 = vmatpush1.msra.mxu0 0.0
    %1254 = vmatprep.subr.mxu0 0.0
    %1255 = vmatpush1.msra.mxu0 0.0
    %1256 = vmatprep.subr.mxu0 0.0
    %1257 = vmatpush1.msra.mxu0 0.0
    %1258 = vmatprep.mubr.f32.mxu0 0.0
    %1259 = vmatmul.mubr.f32.gmra.mrb[0].mxu0 %v1192
    %v1260 = vpop.f32.mrb[0].mxu0
    %v1261 = vadd.f32 0.0, %v1260
    %v1262 = vpop.f32.mrb[0].mxu0
    %1263 = vdwg.mxu0
    %1264 = vrot.lane.b32.xlu0 %v152, 64
    %v1265 = vpop.permute.xlu0 %1264
    %v1268 = vsel %vm161, %v881, 0
    %1270 = vmatprep.subr.mxu0 0.0
    %1271 = vmatpush1.msra.mxu0 %v1265
    %1272 = vmatprep.subr.mxu0 0.0
    %1273 = vmatpush1.msra.mxu0 0.0
    %1274 = vmatprep.subr.mxu0 0.0
    %1275 = vmatpush1.msra.mxu0 0.0
    %1276 = vmatprep.subr.mxu0 0.0
    %1277 = vmatpush1.msra.mxu0 0.0
    %1278 = vmatprep.subr.mxu0 0.0
    %1279 = vmatpush1.msra.mxu0 0.0
    %1280 = vmatprep.subr.mxu0 0.0
    %1281 = vmatpush1.msra.mxu0 0.0
    %1282 = vmatprep.subr.mxu0 0.0
    %1283 = vmatpush1.msra.mxu0 0.0
    %1284 = vmatprep.subr.mxu0 0.0
    %1285 = vmatpush1.msra.mxu0 0.0
    %1286 = vmatprep.subr.mxu0 0.0
    %1287 = vmatpush1.msra.mxu0 0.0
    %1288 = vmatprep.subr.mxu0 0.0
    %1289 = vmatpush1.msra.mxu0 0.0
    %1290 = vmatprep.subr.mxu0 0.0
    %1291 = vmatpush1.msra.mxu0 0.0
    %1292 = vmatprep.subr.mxu0 0.0
    %1293 = vmatpush1.msra.mxu0 0.0
    %1294 = vmatprep.subr.mxu0 0.0
    %1295 = vmatpush1.msra.mxu0 0.0
    %1296 = vmatprep.subr.mxu0 0.0
    %1297 = vmatpush1.msra.mxu0 0.0
    %1298 = vmatprep.subr.mxu0 0.0
    %1299 = vmatpush1.msra.mxu0 0.0
    %1300 = vmatprep.subr.mxu0 0.0
    %1301 = vmatpush1.msra.mxu0 0.0
    %1302 = vmatprep.subr.mxu0 0.0
    %1303 = vmatpush1.msra.mxu0 0.0
    %1304 = vmatprep.subr.mxu0 0.0
    %1305 = vmatpush1.msra.mxu0 0.0
    %1306 = vmatprep.subr.mxu0 0.0
    %1307 = vmatpush1.msra.mxu0 0.0
    %1308 = vmatprep.subr.mxu0 0.0
    %1309 = vmatpush1.msra.mxu0 0.0
    %1310 = vmatprep.subr.mxu0 0.0
    %1311 = vmatpush1.msra.mxu0 0.0
    %1312 = vmatprep.subr.mxu0 0.0
    %1313 = vmatpush1.msra.mxu0 0.0
    %1314 = vmatprep.subr.mxu0 0.0
    %1315 = vmatpush1.msra.mxu0 0.0
    %1316 = vmatprep.subr.mxu0 0.0
    %1317 = vmatpush1.msra.mxu0 0.0
    %1318 = vmatprep.subr.mxu0 0.0
    %1319 = vmatpush1.msra.mxu0 0.0
    %1320 = vmatprep.subr.mxu0 0.0
    %1321 = vmatpush1.msra.mxu0 0.0
    %1322 = vmatprep.subr.mxu0 0.0
    %1323 = vmatpush1.msra.mxu0 0.0
    %1324 = vmatprep.subr.mxu0 0.0
    %1325 = vmatpush1.msra.mxu0 0.0
    %1326 = vmatprep.subr.mxu0 0.0
    %1327 = vmatpush1.msra.mxu0 0.0
    %1328 = vmatprep.subr.mxu0 0.0
    %1329 = vmatpush1.msra.mxu0 0.0
    %1330 = vmatprep.subr.mxu0 0.0
    %1331 = vmatpush1.msra.mxu0 0.0
    %1332 = vmatprep.subr.mxu0 0.0
    %1333 = vmatpush1.msra.mxu0 0.0
    %1334 = vmatprep.mubr.f32.mxu0 0.0
    %1335 = vmatmul.mubr.f32.gmra.mrb[0].mxu0 %v1268
    %v1336 = vpop.f32.mrb[0].mxu0
    %v1337 = vadd.f32 0.0, %v1336
    %v1338 = vpop.f32.mrb[0].mxu0
    %1339 = vdwg.mxu0
    %1340 = vrot.lane.b32.xlu0 %v154, 64
    %v1341 = vpop.permute.xlu0 %1340
    %v1344 = vsel %vm161, %v882, 0
    %1346 = vmatprep.subr.mxu0 0.0
    %1347 = vmatpush1.msra.mxu0 %v1341
    %1348 = vmatprep.subr.mxu0 0.0
    %1349 = vmatpush1.msra.mxu0 0.0
    %1350 = vmatprep.subr.mxu0 0.0
    %1351 = vmatpush1.msra.mxu0 0.0
    %1352 = vmatprep.subr.mxu0 0.0
    %1353 = vmatpush1.msra.mxu0 0.0
    %1354 = vmatprep.subr.mxu0 0.0
    %1355 = vmatpush1.msra.mxu0 0.0
    %1356 = vmatprep.subr.mxu0 0.0
    %1357 = vmatpush1.msra.mxu0 0.0
    %1358 = vmatprep.subr.mxu0 0.0
    %1359 = vmatpush1.msra.mxu0 0.0
    %1360 = vmatprep.subr.mxu0 0.0
    %1361 = vmatpush1.msra.mxu0 0.0
    %1362 = vmatprep.subr.mxu0 0.0
    %1363 = vmatpush1.msra.mxu0 0.0
    %1364 = vmatprep.subr.mxu0 0.0
    %1365 = vmatpush1.msra.mxu0 0.0
    %1366 = vmatprep.subr.mxu0 0.0
    %1367 = vmatpush1.msra.mxu0 0.0
    %1368 = vmatprep.subr.mxu0 0.0
    %1369 = vmatpush1.msra.mxu0 0.0
    %1370 = vmatprep.subr.mxu0 0.0
    %1371 = vmatpush1.msra.mxu0 0.0
    %1372 = vmatprep.subr.mxu0 0.0
    %1373 = vmatpush1.msra.mxu0 0.0
    %1374 = vmatprep.subr.mxu0 0.0
    %1375 = vmatpush1.msra.mxu0 0.0
    %1376 = vmatprep.subr.mxu0 0.0
    %1377 = vmatpush1.msra.mxu0 0.0
    %1378 = vmatprep.subr.mxu0 0.0
    %1379 = vmatpush1.msra.mxu0 0.0
    %1380 = vmatprep.subr.mxu0 0.0
    %1381 = vmatpush1.msra.mxu0 0.0
    %1382 = vmatprep.subr.mxu0 0.0
    %1383 = vmatpush1.msra.mxu0 0.0
    %1384 = vmatprep.subr.mxu0 0.0
    %1385 = vmatpush1.msra.mxu0 0.0
    %1386 = vmatprep.subr.mxu0 0.0
    %1387 = vmatpush1.msra.mxu0 0.0
    %1388 = vmatprep.subr.mxu0 0.0
    %1389 = vmatpush1.msra.mxu0 0.0
    %1390 = vmatprep.subr.mxu0 0.0
    %1391 = vmatpush1.msra.mxu0 0.0
    %1392 = vmatprep.subr.mxu0 0.0
    %1393 = vmatpush1.msra.mxu0 0.0
    %1394 = vmatprep.subr.mxu0 0.0
    %1395 = vmatpush1.msra.mxu0 0.0
    %1396 = vmatprep.subr.mxu0 0.0
    %1397 = vmatpush1.msra.mxu0 0.0
    %1398 = vmatprep.subr.mxu0 0.0
    %1399 = vmatpush1.msra.mxu0 0.0
    %1400 = vmatprep.subr.mxu0 0.0
    %1401 = vmatpush1.msra.mxu0 0.0
    %1402 = vmatprep.subr.mxu0 0.0
    %1403 = vmatpush1.msra.mxu0 0.0
    %1404 = vmatprep.subr.mxu0 0.0
    %1405 = vmatpush1.msra.mxu0 0.0
    %1406 = vmatprep.subr.mxu0 0.0
    %1407 = vmatpush1.msra.mxu0 0.0
    %1408 = vmatprep.subr.mxu0 0.0
    %1409 = vmatpush1.msra.mxu0 0.0
    %1410 = vmatprep.mubr.f32.mxu0 0.0
    %1411 = vmatmul.mubr.f32.gmra.mrb[0].mxu0 %v1344
    %v1412 = vpop.f32.mrb[0].mxu0
    %v1413 = vadd.f32 0.0, %v1412
    %v1414 = vpop.f32.mrb[0].mxu0
    %1415 = vdwg.mxu0
    %1416 = vrot.lane.b32.xlu0 %v156, 64
    %v1417 = vpop.permute.xlu0 %1416
    %v1420 = vsel %vm161, %v883, 0
    %1422 = vmatprep.subr.mxu0 0.0
    %1423 = vmatpush1.msra.mxu0 %v1417
    %1424 = vmatprep.subr.mxu0 0.0
    %1425 = vmatpush1.msra.mxu0 0.0
    %1426 = vmatprep.subr.mxu0 0.0
    %1427 = vmatpush1.msra.mxu0 0.0
    %1428 = vmatprep.subr.mxu0 0.0
    %1429 = vmatpush1.msra.mxu0 0.0
    %1430 = vmatprep.subr.mxu0 0.0
    %1431 = vmatpush1.msra.mxu0 0.0
    %1432 = vmatprep.subr.mxu0 0.0
    %1433 = vmatpush1.msra.mxu0 0.0
    %1434 = vmatprep.subr.mxu0 0.0
    %1435 = vmatpush1.msra.mxu0 0.0
    %1436 = vmatprep.subr.mxu0 0.0
    %1437 = vmatpush1.msra.mxu0 0.0
    %1438 = vmatprep.subr.mxu0 0.0
    %1439 = vmatpush1.msra.mxu0 0.0
    %1440 = vmatprep.subr.mxu0 0.0
    %1441 = vmatpush1.msra.mxu0 0.0
    %1442 = vmatprep.subr.mxu0 0.0
    %1443 = vmatpush1.msra.mxu0 0.0
    %1444 = vmatprep.subr.mxu0 0.0
    %1445 = vmatpush1.msra.mxu0 0.0
    %1446 = vmatprep.subr.mxu0 0.0
    %1447 = vmatpush1.msra.mxu0 0.0
    %1448 = vmatprep.subr.mxu0 0.0
    %1449 = vmatpush1.msra.mxu0 0.0
    %1450 = vmatprep.subr.mxu0 0.0
    %1451 = vmatpush1.msra.mxu0 0.0
    %1452 = vmatprep.subr.mxu0 0.0
    %1453 = vmatpush1.msra.mxu0 0.0
    %1454 = vmatprep.subr.mxu0 0.0
    %1455 = vmatpush1.msra.mxu0 0.0
    %1456 = vmatprep.subr.mxu0 0.0
    %1457 = vmatpush1.msra.mxu0 0.0
    %1458 = vmatprep.subr.mxu0 0.0
    %1459 = vmatpush1.msra.mxu0 0.0
    %1460 = vmatprep.subr.mxu0 0.0
    %1461 = vmatpush1.msra.mxu0 0.0
    %1462 = vmatprep.subr.mxu0 0.0
    %1463 = vmatpush1.msra.mxu0 0.0
    %1464 = vmatprep.subr.mxu0 0.0
    %1465 = vmatpush1.msra.mxu0 0.0
    %1466 = vmatprep.subr.mxu0 0.0
    %1467 = vmatpush1.msra.mxu0 0.0
    %1468 = vmatprep.subr.mxu0 0.0
    %1469 = vmatpush1.msra.mxu0 0.0
    %1470 = vmatprep.subr.mxu0 0.0
    %1471 = vmatpush1.msra.mxu0 0.0
    %1472 = vmatprep.subr.mxu0 0.0
    %1473 = vmatpush1.msra.mxu0 0.0
    %1474 = vmatprep.subr.mxu0 0.0
    %1475 = vmatpush1.msra.mxu0 0.0
    %1476 = vmatprep.subr.mxu0 0.0
    %1477 = vmatpush1.msra.mxu0 0.0
    %1478 = vmatprep.subr.mxu0 0.0
    %1479 = vmatpush1.msra.mxu0 0.0
    %1480 = vmatprep.subr.mxu0 0.0
    %1481 = vmatpush1.msra.mxu0 0.0
    %1482 = vmatprep.subr.mxu0 0.0
    %1483 = vmatpush1.msra.mxu0 0.0
    %1484 = vmatprep.subr.mxu0 0.0
    %1485 = vmatpush1.msra.mxu0 0.0
    %1486 = vmatprep.mubr.f32.mxu0 0.0
    %1487 = vmatmul.mubr.f32.gmra.mrb[0].mxu0 %v1420
    %v1488 = vpop.f32.mrb[0].mxu0
    %v1489 = vadd.f32 0.0, %v1488
    %v1490 = vpop.f32.mrb[0].mxu0
    %1491 = vdwg.mxu0
    %1494 = vrot.lane.b32.xlu0 %v1109, 8
    %v1495 = vpop.permute.xlu0 %1494
    %1496 = vrot.lane.b32.xlu0 %v1185, 8
    %v1497 = vpop.permute.xlu0 %1496
    %1502 = vrot.lane.b32.xlu0 %v1261, 16
    %v1503 = vpop.permute.xlu0 %1502
    %1504 = vrot.lane.b32.xlu0 %v1337, 16
    %v1505 = vpop.permute.xlu0 %1504
    %1510 = vrot.lane.b32.xlu0 %v1413, 24
    %v1511 = vpop.permute.xlu0 %1510
    %1512 = vrot.lane.b32.xlu0 %v1489, 24
    %v1513 = vpop.permute.xlu0 %1512
    %v1516 = vsel %vm161, %v957, %v1495
    %v1517 = vsel %vm161, %v1033, %v1497
    %vm1518 = vcmask 130048
    %v1519 = vsel %vm1518, %v1516, %v1503
    %v1520 = vsel %vm1518, %v1517, %v1505
    %vm1521 = vcmask 195584
    %v1522 = vsel %vm1521, %v1519, %v1511
    %v1523 = vsel %vm1521, %v1520, %v1513
    %v1524 = vlaneseq
    %v1525 = vshrl.u32 %v1524, 7
    %v1526 = vsub.s32 2, %v1525
    %v1527 = vrot.slane %v39, %v1526
    %v1529 = vsel %vm61, %v1522, 0
    %v1532 = vsel %vm61, %v1523, 0
    %1534 = vmatprep.subr.mxu0 0.0
    %1535 = vmatpush1.msra.mxu0 %v25
    %1536 = vmatprep.subr.mxu0 0.0
    %1537 = vmatpush1.msra.mxu0 %v29
    %1538 = vmatprep.subr.mxu0 0.0
    %1539 = vmatpush1.msra.mxu0 %v33
    %1540 = vmatprep.subr.mxu0 0.0
    %1541 = vmatpush1.msra.mxu0 %v37
    %1542 = vmatprep.subr.mxu0 0.0
    %1543 = vmatpush1.msra.mxu0 0.0
    %1544 = vmatprep.subr.mxu0 0.0
    %1545 = vmatpush1.msra.mxu0 0.0
    %1546 = vmatprep.subr.mxu0 0.0
    %1547 = vmatpush1.msra.mxu0 0.0
    %1548 = vmatprep.subr.mxu0 0.0
    %1549 = vmatpush1.msra.mxu0 0.0
    %1550 = vmatprep.subr.mxu0 0.0
    %1551 = vmatpush1.msra.mxu0 0.0
    %1552 = vmatprep.subr.mxu0 0.0
    %1553 = vmatpush1.msra.mxu0 0.0
    %1554 = vmatprep.subr.mxu0 0.0
    %1555 = vmatpush1.msra.mxu0 0.0
    %1556 = vmatprep.subr.mxu0 0.0
    %1557 = vmatpush1.msra.mxu0 0.0
    %1558 = vmatprep.subr.mxu0 0.0
    %1559 = vmatpush1.msra.mxu0 0.0
    %1560 = vmatprep.subr.mxu0 0.0
    %1561 = vmatpush1.msra.mxu0 0.0
    %1562 = vmatprep.subr.mxu0 0.0
    %1563 = vmatpush1.msra.mxu0 0.0
    %1564 = vmatprep.subr.mxu0 0.0
    %1565 = vmatpush1.msra.mxu0 0.0
    %1566 = vmatprep.subr.mxu0 0.0
    %1567 = vmatpush1.msra.mxu0 0.0
    %1568 = vmatprep.subr.mxu0 0.0
    %1569 = vmatpush1.msra.mxu0 0.0
    %1570 = vmatprep.subr.mxu0 0.0
    %1571 = vmatpush1.msra.mxu0 0.0
    %1572 = vmatprep.subr.mxu0 0.0
    %1573 = vmatpush1.msra.mxu0 0.0
    %1574 = vmatprep.subr.mxu0 0.0
    %1575 = vmatpush1.msra.mxu0 0.0
    %1576 = vmatprep.subr.mxu0 0.0
    %1577 = vmatpush1.msra.mxu0 0.0
    %1578 = vmatprep.subr.mxu0 0.0
    %1579 = vmatpush1.msra.mxu0 0.0
    %1580 = vmatprep.subr.mxu0 0.0
    %1581 = vmatpush1.msra.mxu0 0.0
    %1582 = vmatprep.subr.mxu0 0.0
    %1583 = vmatpush1.msra.mxu0 0.0
    %1584 = vmatprep.subr.mxu0 0.0
    %1585 = vmatpush1.msra.mxu0 0.0
    %1586 = vmatprep.subr.mxu0 0.0
    %1587 = vmatpush1.msra.mxu0 0.0
    %1588 = vmatprep.subr.mxu0 0.0
    %1589 = vmatpush1.msra.mxu0 0.0
    %1590 = vmatprep.subr.mxu0 0.0
    %1591 = vmatpush1.msra.mxu0 0.0
    %1592 = vmatprep.subr.mxu0 0.0
    %1593 = vmatpush1.msra.mxu0 0.0
    %1594 = vmatprep.subr.mxu0 0.0
    %1595 = vmatpush1.msra.mxu0 0.0
    %1596 = vmatprep.subr.mxu0 0.0
    %1597 = vmatpush1.msra.mxu0 0.0
    %1598 = vmatprep.mubr.f32.mxu0 0.0
    %1599 = vmatmul.mubr.f32.gmra.mrb[0].mxu0 %v1529
    %v1600 = vpop.f32.mrb[0].mxu0
    %v1601 = vadd.f32 %v1527, %v1600
    %v1602 = vpop.f32.mrb[0].mxu0
    %1603 = vmatprep.mubr.f32.mxu0 0.0
    %1604 = vmatmul.mubr.f32.gmra.mrb[0].mxu0 %v1532
    %v1605 = vpop.f32.mrb[0].mxu0
    %v1606 = vadd.f32 %v1527, %v1605
    %v1607 = vpop.f32.mrb[0].mxu0
    %1608 = vdwg.mxu0
    %v1609 = vlaneseq
    %v1610 = vshrl.u32 %v1609, 7
    %v1611 = vsub.s32 3, %v1610
    %v1612 = vrot.slane %v39, %v1611
    %1617 = vrot.lane.b32.xlu0 %v25, 96
    %v1618 = vpop.permute.xlu0 %1617
    %1619 = vrot.lane.b32.xlu0 %v29, 96
    %v1620 = vpop.permute.xlu0 %1619
    %1621 = vrot.lane.b32.xlu0 %v33, 96
    %v1622 = vpop.permute.xlu0 %1621
    %1623 = vrot.lane.b32.xlu0 %v37, 96
    %v1624 = vpop.permute.xlu0 %1623
    %v1630 = vsel %vm61, %v1601, 0
    %v1633 = vsel %vm61, %v1606, 0
    %1635 = vmatprep.subr.mxu0 0.0
    %1636 = vmatpush1.msra.mxu0 %v1618
    %1637 = vmatprep.subr.mxu0 0.0
    %1638 = vmatpush1.msra.mxu0 %v1620
    %1639 = vmatprep.subr.mxu0 0.0
    %1640 = vmatpush1.msra.mxu0 %v1622
    %1641 = vmatprep.subr.mxu0 0.0
    %1642 = vmatpush1.msra.mxu0 %v1624
    %1643 = vmatprep.subr.mxu0 0.0
    %1644 = vmatpush1.msra.mxu0 0.0
    %1645 = vmatprep.subr.mxu0 0.0
    %1646 = vmatpush1.msra.mxu0 0.0
    %1647 = vmatprep.subr.mxu0 0.0
    %1648 = vmatpush1.msra.mxu0 0.0
    %1649 = vmatprep.subr.mxu0 0.0
    %1650 = vmatpush1.msra.mxu0 0.0
    %1651 = vmatprep.subr.mxu0 0.0
    %1652 = vmatpush1.msra.mxu0 0.0
    %1653 = vmatprep.subr.mxu0 0.0
    %1654 = vmatpush1.msra.mxu0 0.0
    %1655 = vmatprep.subr.mxu0 0.0
    %1656 = vmatpush1.msra.mxu0 0.0
    %1657 = vmatprep.subr.mxu0 0.0
    %1658 = vmatpush1.msra.mxu0 0.0
    %1659 = vmatprep.subr.mxu0 0.0
    %1660 = vmatpush1.msra.mxu0 0.0
    %1661 = vmatprep.subr.mxu0 0.0
    %1662 = vmatpush1.msra.mxu0 0.0
    %1663 = vmatprep.subr.mxu0 0.0
    %1664 = vmatpush1.msra.mxu0 0.0
    %1665 = vmatprep.subr.mxu0 0.0
    %1666 = vmatpush1.msra.mxu0 0.0
    %1667 = vmatprep.subr.mxu0 0.0
    %1668 = vmatpush1.msra.mxu0 0.0
    %1669 = vmatprep.subr.mxu0 0.0
    %1670 = vmatpush1.msra.mxu0 0.0
    %1671 = vmatprep.subr.mxu0 0.0
    %1672 = vmatpush1.msra.mxu0 0.0
    %1673 = vmatprep.subr.mxu0 0.0
    %1674 = vmatpush1.msra.mxu0 0.0
    %1675 = vmatprep.subr.mxu0 0.0
    %1676 = vmatpush1.msra.mxu0 0.0
    %1677 = vmatprep.subr.mxu0 0.0
    %1678 = vmatpush1.msra.mxu0 0.0
    %1679 = vmatprep.subr.mxu0 0.0
    %1680 = vmatpush1.msra.mxu0 0.0
    %1681 = vmatprep.subr.mxu0 0.0
    %1682 = vmatpush1.msra.mxu0 0.0
    %1683 = vmatprep.subr.mxu0 0.0
    %1684 = vmatpush1.msra.mxu0 0.0
    %1685 = vmatprep.subr.mxu0 0.0
    %1686 = vmatpush1.msra.mxu0 0.0
    %1687 = vmatprep.subr.mxu0 0.0
    %1688 = vmatpush1.msra.mxu0 0.0
    %1689 = vmatprep.subr.mxu0 0.0
    %1690 = vmatpush1.msra.mxu0 0.0
    %1691 = vmatprep.subr.mxu0 0.0
    %1692 = vmatpush1.msra.mxu0 0.0
    %1693 = vmatprep.subr.mxu0 0.0
    %1694 = vmatpush1.msra.mxu0 0.0
    %1695 = vmatprep.subr.mxu0 0.0
    %1696 = vmatpush1.msra.mxu0 0.0
    %1697 = vmatprep.subr.mxu0 0.0
    %1698 = vmatpush1.msra.mxu0 0.0
    %1699 = vmatprep.mubr.f32.mxu0 0.0
    %1700 = vmatmul.mubr.f32.gmra.mrb[0].mxu0 %v1630
    %v1701 = vpop.f32.mrb[0].mxu0
    %v1702 = vadd.f32 %v1612, %v1701
    %v1703 = vpop.f32.mrb[0].mxu0
    %1704 = vmatprep.mubr.f32.mxu0 0.0
    %1705 = vmatmul.mubr.f32.gmra.mrb[0].mxu0 %v1633
    %v1706 = vpop.f32.mrb[0].mxu0
    %v1707 = vadd.f32 %v1612, %v1706
    %v1708 = vpop.f32.mrb[0].mxu0
    %1709 = vdwg.mxu0
    %v1710 = vmul.f32 %v1702, 0.5
    %v1711 = vmul.f32 %v1707, 0.5
    %v1712 = vmul.f32 %v1702, 0.70710677
    %v1713 = vmul.f32 %v1707, 0.70710677
    %v1714 = vand.u32 2147483647, %v1712
    %v1715 = vand.u32 2147483647, %v1713
    %v1716 = vmul.f32 %v1714, 0.3275911
    %v1717 = vmul.f32 %v1715, 0.3275911
    %v1718 = vadd.f32 %v1716, 1.0
    %v1719 = vadd.f32 %v1717, 1.0
    %v1720 = vrcp.pop %v1718
    %v1721 = vrcp.pop %v1719
    %v1722 = vmul.f32 %v1720, 1.0614054
    %v1723 = vmul.f32 %v1721, 1.0614054
    %v1724 = vadd.f32 %v1722, -1.4531521
    %v1725 = vadd.f32 %v1723, -1.4531521
    %v1726 = vmul.f32 %v1724, %v1720
    %v1727 = vmul.f32 %v1725, %v1721
    %v1728 = vadd.f32 %v1726, 1.4214138
    %v1729 = vadd.f32 %v1727, 1.4214138
    %v1730 = vmul.f32 %v1728, %v1720
    %v1731 = vmul.f32 %v1729, %v1721
    %v1732 = vadd.f32 %v1730, -0.28449672
    %v1733 = vadd.f32 %v1731, -0.28449672
    %v1734 = vmul.f32 %v1732, %v1720
    %v1735 = vmul.f32 %v1733, %v1721
    %v1736 = vadd.f32 %v1734, 0.2548296
    %v1737 = vadd.f32 %v1735, 0.2548296
    %v1738 = vmul.f32 %v1736, %v1720
    %v1739 = vmul.f32 %v1737, %v1721
    %v1740 = vsub.f32 0.0, %v1714
    %v1741 = vsub.f32 0.0, %v1715
    %v1742 = vmul.f32 %v1740, %v1714
    %v1743 = vmul.f32 %v1741, %v1715
    %v1744 = vmul.f32 %v1742, 1.442695
    %v1745 = vpow.pop %v1744
    %v1746 = vmul.f32 %v1743, 1.442695
    %v1747 = vpow.pop %v1746
    %v1748 = vmul.f32 %v1738, %v1745
    %v1749 = vmul.f32 %v1739, %v1747
    %v1750 = vsub.f32 1.0, %v1748
    %v1751 = vsub.f32 1.0, %v1749
    %vm1752 = vcmp.ge.f32.partialorder %v1712, 0.0
    %vm1753 = vcmp.ge.f32.partialorder %v1713, 0.0
    %v1754 = vsub.f32 0.0, %v1750
    %v1755 = vsub.f32 0.0, %v1751
    %v1756 = vsel %vm1752, %v1750, %v1754
    %v1757 = vsel %vm1753, %v1751, %v1755
    %v1758 = vadd.f32 %v1756, 1.0
    %v1759 = vadd.f32 %v1757, 1.0
    %v1760 = vmul.f32 %v1710, %v1758
    %v1761 = vmul.f32 %v1711, %v1759
    %v1762 = vlaneseq
    %v1763 = vshrl.u32 %v1762, 7
    %v1764 = vsub.s32 4, %v1763
    %v1765 = vrot.slane %v39, %v1764
    %1766 = vrot.lane.b32.xlu0 %v25, 64
    %v1767 = vpop.permute.xlu0 %1766
    %1768 = vrot.lane.b32.xlu0 %v29, 64
    %v1769 = vpop.permute.xlu0 %1768
    %1770 = vrot.lane.b32.xlu0 %v33, 64
    %v1771 = vpop.permute.xlu0 %1770
    %1772 = vrot.lane.b32.xlu0 %v37, 64
    %v1773 = vpop.permute.xlu0 %1772
    %v1779 = vsel %vm61, %v1760, 0
    %v1782 = vsel %vm61, %v1761, 0
    %1784 = vmatprep.subr.mxu0 0.0
    %1785 = vmatpush1.msra.mxu0 %v1767
    %1786 = vmatprep.subr.mxu0 0.0
    %1787 = vmatpush1.msra.mxu0 %v1769
    %1788 = vmatprep.subr.mxu0 0.0
    %1789 = vmatpush1.msra.mxu0 %v1771
    %1790 = vmatprep.subr.mxu0 0.0
    %1791 = vmatpush1.msra.mxu0 %v1773
    %1792 = vmatprep.subr.mxu0 0.0
    %1793 = vmatpush1.msra.mxu0 0.0
    %1794 = vmatprep.subr.mxu0 0.0
    %1795 = vmatpush1.msra.mxu0 0.0
    %1796 = vmatprep.subr.mxu0 0.0
    %1797 = vmatpush1.msra.mxu0 0.0
    %1798 = vmatprep.subr.mxu0 0.0
    %1799 = vmatpush1.msra.mxu0 0.0
    %1800 = vmatprep.subr.mxu0 0.0
    %1801 = vmatpush1.msra.mxu0 0.0
    %1802 = vmatprep.subr.mxu0 0.0
    %1803 = vmatpush1.msra.mxu0 0.0
    %1804 = vmatprep.subr.mxu0 0.0
    %1805 = vmatpush1.msra.mxu0 0.0
    %1806 = vmatprep.subr.mxu0 0.0
    %1807 = vmatpush1.msra.mxu0 0.0
    %1808 = vmatprep.subr.mxu0 0.0
    %1809 = vmatpush1.msra.mxu0 0.0
    %1810 = vmatprep.subr.mxu0 0.0
    %1811 = vmatpush1.msra.mxu0 0.0
    %1812 = vmatprep.subr.mxu0 0.0
    %1813 = vmatpush1.msra.mxu0 0.0
    %1814 = vmatprep.subr.mxu0 0.0
    %1815 = vmatpush1.msra.mxu0 0.0
    %1816 = vmatprep.subr.mxu0 0.0
    %1817 = vmatpush1.msra.mxu0 0.0
    %1818 = vmatprep.subr.mxu0 0.0
    %1819 = vmatpush1.msra.mxu0 0.0
    %1820 = vmatprep.subr.mxu0 0.0
    %1821 = vmatpush1.msra.mxu0 0.0
    %1822 = vmatprep.subr.mxu0 0.0
    %1823 = vmatpush1.msra.mxu0 0.0
    %1824 = vmatprep.subr.mxu0 0.0
    %1825 = vmatpush1.msra.mxu0 0.0
    %1826 = vmatprep.subr.mxu0 0.0
    %1827 = vmatpush1.msra.mxu0 0.0
    %1828 = vmatprep.subr.mxu0 0.0
    %1829 = vmatpush1.msra.mxu0 0.0
    %1830 = vmatprep.subr.mxu0 0.0
    %1831 = vmatpush1.msra.mxu0 0.0
    %1832 = vmatprep.subr.mxu0 0.0
    %1833 = vmatpush1.msra.mxu0 0.0
    %1834 = vmatprep.subr.mxu0 0.0
    %1835 = vmatpush1.msra.mxu0 0.0
    %1836 = vmatprep.subr.mxu0 0.0
    %1837 = vmatpush1.msra.mxu0 0.0
    %1838 = vmatprep.subr.mxu0 0.0
    %1839 = vmatpush1.msra.mxu0 0.0
    %1840 = vmatprep.subr.mxu0 0.0
    %1841 = vmatpush1.msra.mxu0 0.0
    %1842 = vmatprep.subr.mxu0 0.0
    %1843 = vmatpush1.msra.mxu0 0.0
    %1844 = vmatprep.subr.mxu0 0.0
    %1845 = vmatpush1.msra.mxu0 0.0
    %1846 = vmatprep.subr.mxu0 0.0
    %1847 = vmatpush1.msra.mxu0 0.0
    %1848 = vmatprep.mubr.f32.mxu0 0.0
    %1849 = vmatmul.mubr.f32.gmra.mrb[0].mxu0 %v1779
    %v1850 = vpop.f32.mrb[0].mxu0
    %v1851 = vadd.f32 %v1765, %v1850
    %v1852 = vpop.f32.mrb[0].mxu0
    %1853 = vmatprep.mubr.f32.mxu0 0.0
    %1854 = vmatmul.mubr.f32.gmra.mrb[0].mxu0 %v1782
    %v1855 = vpop.f32.mrb[0].mxu0
    %v1856 = vadd.f32 %v1765, %v1855
    %v1857 = vpop.f32.mrb[0].mxu0
    %1858 = vdwg.mxu0
    %v1859 = vadd.f32 %v1851, %v1601
    %v1860 = vadd.f32 %v1856, %v1606
    %v1861 = vadd.f32 %v1859, %v21
    %v1862 = vadd.f32 %v1860, %v22
    %v1863 = vsel %vm61, %v1861, 0.0
    %1864 = vadd.xlane.f32.xlu0 %v1863
    %v1865 = vpop.xlane.xlu0 %1864
    %v1866 = vsel %vm61, %v1862, 0.0
    %1867 = vadd.xlane.f32.xlu0 %v1866
    %v1868 = vpop.xlane.xlu0 %1867
    %v1869 = vrcp.pop 32.0
    %v1870 = vmul.f32 %v1865, %v1869
    %v1871 = vmul.f32 %v1868, %v1869
    %v1872 = vsub.f32 %v1861, %v1870
    %v1873 = vsub.f32 %v1862, %v1871
    %v1874 = vmul.f32 %v1872, %v1872
    %v1875 = vmul.f32 %v1873, %v1873
    %v1876 = vsel %vm61, %v1874, 0.0
    %1877 = vadd.xlane.f32.xlu0 %v1876
    %v1878 = vpop.xlane.xlu0 %1877
    %v1879 = vsel %vm61, %v1875, 0.0
    %1880 = vadd.xlane.f32.xlu0 %v1879
    %v1881 = vpop.xlane.xlu0 %1880
    %v1882 = vmul.f32 %v1878, %v1869
    %v1883 = vmul.f32 %v1881, %v1869
    %v1884 = vadd.f32 %v1882, 1e-12
    %v1885 = vadd.f32 %v1883, 1e-12
    %v1886 = vrsqrt.pop %v1884
    %v1887 = vrsqrt.pop %v1885
    %v1888 = vmul.f32 %v1872, %v1886
    %v1889 = vmul.f32 %v1873, %v1887
    %v1890 = vlaneseq
    %v1891 = vshrl.u32 %v1890, 7
    %v1892 = vsub.s32 0, %v1891
    %v1893 = vrot.slane %v40, %v1892
    %v1894 = vmul.f32 %v1888, %v1893
    %v1895 = vmul.f32 %v1889, %v1893
    %v1896 = vlaneseq
    %v1897 = vshrl.u32 %v1896, 7
    %v1898 = vsub.s32 1, %v1897
    %v1899 = vrot.slane %v40, %v1898
    %v1900 = vadd.f32 %v1894, %v1899
    %v1901 = vadd.f32 %v1895, %v1899
    %v1902 = vlaneseq
    %v1903 = vshrl.u32 %v1902, 7
    %v1904 = vsub.s32 1, %v1903
    %v1905 = vrot.slane %v39, %v1904
    %v1907 = vsel %vm61, %v1900, 0
    %v1910 = vsel %vm61, %v1901, 0
    %1912 = vmatprep.subr.mxu0 0.0
    %1913 = vmatpush1.msra.mxu0 %v24
    %1914 = vmatprep.subr.mxu0 0.0
    %1915 = vmatpush1.msra.mxu0 %v28
    %1916 = vmatprep.subr.mxu0 0.0
    %1917 = vmatpush1.msra.mxu0 %v32
    %1918 = vmatprep.subr.mxu0 0.0
    %1919 = vmatpush1.msra.mxu0 %v36
    %1920 = vmatprep.subr.mxu0 0.0
    %1921 = vmatpush1.msra.mxu0 0.0
    %1922 = vmatprep.subr.mxu0 0.0
    %1923 = vmatpush1.msra.mxu0 0.0
    %1924 = vmatprep.subr.mxu0 0.0
    %1925 = vmatpush1.msra.mxu0 0.0
    %1926 = vmatprep.subr.mxu0 0.0
    %1927 = vmatpush1.msra.mxu0 0.0
    %1928 = vmatprep.subr.mxu0 0.0
    %1929 = vmatpush1.msra.mxu0 0.0
    %1930 = vmatprep.subr.mxu0 0.0
    %1931 = vmatpush1.msra.mxu0 0.0
    %1932 = vmatprep.subr.mxu0 0.0
    %1933 = vmatpush1.msra.mxu0 0.0
    %1934 = vmatprep.subr.mxu0 0.0
    %1935 = vmatpush1.msra.mxu0 0.0
    %1936 = vmatprep.subr.mxu0 0.0
    %1937 = vmatpush1.msra.mxu0 0.0
    %1938 = vmatprep.subr.mxu0 0.0
    %1939 = vmatpush1.msra.mxu0 0.0
    %1940 = vmatprep.subr.mxu0 0.0
    %1941 = vmatpush1.msra.mxu0 0.0
    %1942 = vmatprep.subr.mxu0 0.0
    %1943 = vmatpush1.msra.mxu0 0.0
    %1944 = vmatprep.subr.mxu0 0.0
    %1945 = vmatpush1.msra.mxu0 0.0
    %1946 = vmatprep.subr.mxu0 0.0
    %1947 = vmatpush1.msra.mxu0 0.0
    %1948 = vmatprep.subr.mxu0 0.0
    %1949 = vmatpush1.msra.mxu0 0.0
    %1950 = vmatprep.subr.mxu0 0.0
    %1951 = vmatpush1.msra.mxu0 0.0
    %1952 = vmatprep.subr.mxu0 0.0
    %1953 = vmatpush1.msra.mxu0 0.0
    %1954 = vmatprep.subr.mxu0 0.0
    %1955 = vmatpush1.msra.mxu0 0.0
    %1956 = vmatprep.subr.mxu0 0.0
    %1957 = vmatpush1.msra.mxu0 0.0
    %1958 = vmatprep.subr.mxu0 0.0
    %1959 = vmatpush1.msra.mxu0 0.0
    %1960 = vmatprep.subr.mxu0 0.0
    %1961 = vmatpush1.msra.mxu0 0.0
    %1962 = vmatprep.subr.mxu0 0.0
    %1963 = vmatpush1.msra.mxu0 0.0
    %1964 = vmatprep.subr.mxu0 0.0
    %1965 = vmatpush1.msra.mxu0 0.0
    %1966 = vmatprep.subr.mxu0 0.0
    %1967 = vmatpush1.msra.mxu0 0.0
    %1968 = vmatprep.subr.mxu0 0.0
    %1969 = vmatpush1.msra.mxu0 0.0
    %1970 = vmatprep.subr.mxu0 0.0
    %1971 = vmatpush1.msra.mxu0 0.0
    %1972 = vmatprep.subr.mxu0 0.0
    %1973 = vmatpush1.msra.mxu0 0.0
    %1974 = vmatprep.subr.mxu0 0.0
    %1975 = vmatpush1.msra.mxu0 0.0
    %1976 = vmatprep.mubr.f32.mxu0 0.0
    %1977 = vmatmul.mubr.f32.gmra.mrb[0].mxu0 %v1907
    %v1978 = vpop.f32.mrb[0].mxu0
    %v1979 = vadd.f32 %v1905, %v1978
    %v1980 = vpop.f32.mrb[0].mxu0
    %1981 = vmatprep.mubr.f32.mxu0 0.0
    %1982 = vmatmul.mubr.f32.gmra.mrb[0].mxu0 %v1910
    %v1983 = vpop.f32.mrb[0].mxu0
    %v1984 = vadd.f32 %v1905, %v1983
    %v1985 = vpop.f32.mrb[0].mxu0
    %1986 = vdwg.mxu0
    %v1987 = vmul.f32 %v1979, 0.5
    %v1988 = vmul.f32 %v1984, 0.5
    %v1989 = vmul.f32 %v1979, 0.70710677
    %v1990 = vmul.f32 %v1984, 0.70710677
    %v1991 = vand.u32 2147483647, %v1989
    %v1992 = vand.u32 2147483647, %v1990
    %v1993 = vmul.f32 %v1991, 0.3275911
    %v1994 = vmul.f32 %v1992, 0.3275911
    %v1995 = vadd.f32 %v1993, 1.0
    %v1996 = vadd.f32 %v1994, 1.0
    %v1997 = vrcp.pop %v1995
    %v1998 = vrcp.pop %v1996
    %v1999 = vmul.f32 %v1997, 1.0614054
    %v2000 = vmul.f32 %v1998, 1.0614054
    %v2001 = vadd.f32 %v1999, -1.4531521
    %v2002 = vadd.f32 %v2000, -1.4531521
    %v2003 = vmul.f32 %v2001, %v1997
    %v2004 = vmul.f32 %v2002, %v1998
    %v2005 = vadd.f32 %v2003, 1.4214138
    %v2006 = vadd.f32 %v2004, 1.4214138
    %v2007 = vmul.f32 %v2005, %v1997
    %v2008 = vmul.f32 %v2006, %v1998
    %v2009 = vadd.f32 %v2007, -0.28449672
    %v2010 = vadd.f32 %v2008, -0.28449672
    %v2011 = vmul.f32 %v2009, %v1997
    %v2012 = vmul.f32 %v2010, %v1998
    %v2013 = vadd.f32 %v2011, 0.2548296
    %v2014 = vadd.f32 %v2012, 0.2548296
    %v2015 = vmul.f32 %v2013, %v1997
    %v2016 = vmul.f32 %v2014, %v1998
    %v2017 = vsub.f32 0.0, %v1991
    %v2018 = vsub.f32 0.0, %v1992
    %v2019 = vmul.f32 %v2017, %v1991
    %v2020 = vmul.f32 %v2018, %v1992
    %v2021 = vmul.f32 %v2019, 1.442695
    %v2022 = vpow.pop %v2021
    %v2023 = vmul.f32 %v2020, 1.442695
    %v2024 = vpow.pop %v2023
    %v2025 = vmul.f32 %v2015, %v2022
    %v2026 = vmul.f32 %v2016, %v2024
    %v2027 = vsub.f32 1.0, %v2025
    %v2028 = vsub.f32 1.0, %v2026
    %vm2029 = vcmp.ge.f32.partialorder %v1989, 0.0
    %vm2030 = vcmp.ge.f32.partialorder %v1990, 0.0
    %v2031 = vsub.f32 0.0, %v2027
    %v2032 = vsub.f32 0.0, %v2028
    %v2033 = vsel %vm2029, %v2027, %v2031
    %v2034 = vsel %vm2030, %v2028, %v2032
    %v2035 = vadd.f32 %v2033, 1.0
    %v2036 = vadd.f32 %v2034, 1.0
    %v2037 = vmul.f32 %v1987, %v2035
    %v2038 = vmul.f32 %v1988, %v2036
    %v2039 = vlaneseq
    %v2040 = vshrl.u32 %v2039, 7
    %v2041 = vsub.s32 5, %v2040
    %v2042 = vrot.slane %v39, %v2041
    %2043 = vmatprep.subr.mxu0 0.0
    %2044 = vmatpush1.msra.mxu0 %v41
    %2045 = vmatprep.subr.mxu0 0.0
    %2046 = vmatpush1.msra.mxu0 %v42
    %2047 = vmatprep.subr.mxu0 0.0
    %2048 = vmatpush1.msra.mxu0 %v43
    %2049 = vmatprep.subr.mxu0 0.0
    %2050 = vmatpush1.msra.mxu0 %v44
    %2051 = vmatprep.subr.mxu0 0.0
    %2052 = vmatpush1.msra.mxu0 %v45
    %2053 = vmatprep.subr.mxu0 0.0
    %2054 = vmatpush1.msra.mxu0 %v46
    %2055 = vmatprep.subr.mxu0 0.0
    %2056 = vmatpush1.msra.mxu0 %v47
    %2057 = vmatprep.subr.mxu0 0.0
    %2058 = vmatpush1.msra.mxu0 %v48
    %2059 = vmatprep.subr.mxu0 0.0
    %2060 = vmatpush1.msra.mxu0 %v49
    %2061 = vmatprep.subr.mxu0 0.0
    %2062 = vmatpush1.msra.mxu0 %v50
    %2063 = vmatprep.subr.mxu0 0.0
    %2064 = vmatpush1.msra.mxu0 %v51
    %2065 = vmatprep.subr.mxu0 0.0
    %2066 = vmatpush1.msra.mxu0 %v52
    %2067 = vmatprep.subr.mxu0 0.0
    %2068 = vmatpush1.msra.mxu0 %v53
    %2069 = vmatprep.subr.mxu0 0.0
    %2070 = vmatpush1.msra.mxu0 %v54
    %2071 = vmatprep.subr.mxu0 0.0
    %2072 = vmatpush1.msra.mxu0 %v55
    %2073 = vmatprep.subr.mxu0 0.0
    %2074 = vmatpush1.msra.mxu0 %v56
    %2075 = vmatprep.subr.mxu0 0.0
    %2076 = vmatpush1.msra.mxu0 0.0
    %2077 = vmatprep.subr.mxu0 0.0
    %2078 = vmatpush1.msra.mxu0 0.0
    %2079 = vmatprep.subr.mxu0 0.0
    %2080 = vmatpush1.msra.mxu0 0.0
    %2081 = vmatprep.subr.mxu0 0.0
    %2082 = vmatpush1.msra.mxu0 0.0
    %2083 = vmatprep.subr.mxu0 0.0
    %2084 = vmatpush1.msra.mxu0 0.0
    %2085 = vmatprep.subr.mxu0 0.0
    %2086 = vmatpush1.msra.mxu0 0.0
    %2087 = vmatprep.subr.mxu0 0.0
    %2088 = vmatpush1.msra.mxu0 0.0
    %2089 = vmatprep.subr.mxu0 0.0
    %2090 = vmatpush1.msra.mxu0 0.0
    %2091 = vmatprep.subr.mxu0 0.0
    %2092 = vmatpush1.msra.mxu0 0.0
    %2093 = vmatprep.subr.mxu0 0.0
    %2094 = vmatpush1.msra.mxu0 0.0
    %2095 = vmatprep.subr.mxu0 0.0
    %2096 = vmatpush1.msra.mxu0 0.0
    %2097 = vmatprep.subr.mxu0 0.0
    %2098 = vmatpush1.msra.mxu0 0.0
    %2099 = vmatprep.subr.mxu0 0.0
    %2100 = vmatpush1.msra.mxu0 0.0
    %2101 = vmatprep.subr.mxu0 0.0
    %2102 = vmatpush1.msra.mxu0 0.0
    %2103 = vmatprep.subr.mxu0 0.0
    %2104 = vmatpush1.msra.mxu0 0.0
    %2105 = vmatprep.subr.mxu0 0.0
    %2106 = vmatpush1.msra.mxu0 0.0
    %2107 = vmatprep.mubr.f32.mxu0 0.0
    %2108 = vmatmul.mubr.f32.gmra.mrb[0].mxu0 %v2037
    %v2109 = vpop.f32.mrb[0].mxu0
    %v2110 = vadd.f32 %v2042, %v2109
    %v2111 = vpop.f32.mrb[0].mxu0
    %2112 = vmatprep.mubr.f32.mxu0 0.0
    %2113 = vmatmul.mubr.f32.gmra.mrb[0].mxu0 %v2038
    %v2114 = vpop.f32.mrb[0].mxu0
    %v2115 = vadd.f32 %v2042, %v2114
    %v2116 = vpop.f32.mrb[0].mxu0
    %2117 = vdwg.mxu0
    %v2118 = vlaneseq
    %v2119 = vshrl.u32 %v2118, 7
    %v2120 = vsub.s32 6, %v2119
    %v2121 = vrot.slane %v39, %v2120
    %2122 = vrot.lane.b32.xlu0 %v25, 32
    %v2123 = vpop.permute.xlu0 %2122
    %2124 = vrot.lane.b32.xlu0 %v29, 32
    %v2125 = vpop.permute.xlu0 %2124
    %2126 = vrot.lane.b32.xlu0 %v33, 32
    %v2127 = vpop.permute.xlu0 %2126
    %2128 = vrot.lane.b32.xlu0 %v37, 32
    %v2129 = vpop.permute.xlu0 %2128
    %v2135 = vsel %vm61, %v2110, 0
    %v2138 = vsel %vm61, %v2115, 0
    %2140 = vmatprep.subr.mxu0 0.0
    %2141 = vmatpush1.msra.mxu0 %v2123
    %2142 = vmatprep.subr.mxu0 0.0
    %2143 = vmatpush1.msra.mxu0 %v2125
    %2144 = vmatprep.subr.mxu0 0.0
    %2145 = vmatpush1.msra.mxu0 %v2127
    %2146 = vmatprep.subr.mxu0 0.0
    %2147 = vmatpush1.msra.mxu0 %v2129
    %2148 = vmatprep.subr.mxu0 0.0
    %2149 = vmatpush1.msra.mxu0 0.0
    %2150 = vmatprep.subr.mxu0 0.0
    %2151 = vmatpush1.msra.mxu0 0.0
    %2152 = vmatprep.subr.mxu0 0.0
    %2153 = vmatpush1.msra.mxu0 0.0
    %2154 = vmatprep.subr.mxu0 0.0
    %2155 = vmatpush1.msra.mxu0 0.0
    %2156 = vmatprep.subr.mxu0 0.0
    %2157 = vmatpush1.msra.mxu0 0.0
    %2158 = vmatprep.subr.mxu0 0.0
    %2159 = vmatpush1.msra.mxu0 0.0
    %2160 = vmatprep.subr.mxu0 0.0
    %2161 = vmatpush1.msra.mxu0 0.0
    %2162 = vmatprep.subr.mxu0 0.0
    %2163 = vmatpush1.msra.mxu0 0.0
    %2164 = vmatprep.subr.mxu0 0.0
    %2165 = vmatpush1.msra.mxu0 0.0
    %2166 = vmatprep.subr.mxu0 0.0
    %2167 = vmatpush1.msra.mxu0 0.0
    %2168 = vmatprep.subr.mxu0 0.0
    %2169 = vmatpush1.msra.mxu0 0.0
    %2170 = vmatprep.subr.mxu0 0.0
    %2171 = vmatpush1.msra.mxu0 0.0
    %2172 = vmatprep.subr.mxu0 0.0
    %2173 = vmatpush1.msra.mxu0 0.0
    %2174 = vmatprep.subr.mxu0 0.0
    %2175 = vmatpush1.msra.mxu0 0.0
    %2176 = vmatprep.subr.mxu0 0.0
    %2177 = vmatpush1.msra.mxu0 0.0
    %2178 = vmatprep.subr.mxu0 0.0
    %2179 = vmatpush1.msra.mxu0 0.0
    %2180 = vmatprep.subr.mxu0 0.0
    %2181 = vmatpush1.msra.mxu0 0.0
    %2182 = vmatprep.subr.mxu0 0.0
    %2183 = vmatpush1.msra.mxu0 0.0
    %2184 = vmatprep.subr.mxu0 0.0
    %2185 = vmatpush1.msra.mxu0 0.0
    %2186 = vmatprep.subr.mxu0 0.0
    %2187 = vmatpush1.msra.mxu0 0.0
    %2188 = vmatprep.subr.mxu0 0.0
    %2189 = vmatpush1.msra.mxu0 0.0
    %2190 = vmatprep.subr.mxu0 0.0
    %2191 = vmatpush1.msra.mxu0 0.0
    %2192 = vmatprep.subr.mxu0 0.0
    %2193 = vmatpush1.msra.mxu0 0.0
    %2194 = vmatprep.subr.mxu0 0.0
    %2195 = vmatpush1.msra.mxu0 0.0
    %2196 = vmatprep.subr.mxu0 0.0
    %2197 = vmatpush1.msra.mxu0 0.0
    %2198 = vmatprep.subr.mxu0 0.0
    %2199 = vmatpush1.msra.mxu0 0.0
    %2200 = vmatprep.subr.mxu0 0.0
    %2201 = vmatpush1.msra.mxu0 0.0
    %2202 = vmatprep.subr.mxu0 0.0
    %2203 = vmatpush1.msra.mxu0 0.0
    %2204 = vmatprep.mubr.f32.mxu0 0.0
    %2205 = vmatmul.mubr.f32.gmra.mrb[0].mxu0 %v2135
    %v2206 = vpop.f32.mrb[0].mxu0
    %v2207 = vadd.f32 %v2121, %v2206
    %v2208 = vpop.f32.mrb[0].mxu0
    %2209 = vmatprep.mubr.f32.mxu0 0.0
    %2210 = vmatmul.mubr.f32.gmra.mrb[0].mxu0 %v2138
    %v2211 = vpop.f32.mrb[0].mxu0
    %v2212 = vadd.f32 %v2121, %v2211
    %v2213 = vpop.f32.mrb[0].mxu0
    %2214 = vdwg.mxu0
    %v2215 = vmul.f32 %v2207, 0.5
    %v2216 = vmul.f32 %v2212, 0.5
    %v2217 = vmul.f32 %v2207, 0.70710677
    %v2218 = vmul.f32 %v2212, 0.70710677
    %v2219 = vand.u32 2147483647, %v2217
    %v2220 = vand.u32 2147483647, %v2218
    %v2221 = vmul.f32 %v2219, 0.3275911
    %v2222 = vmul.f32 %v2220, 0.3275911
    %v2223 = vadd.f32 %v2221, 1.0
    %v2224 = vadd.f32 %v2222, 1.0
    %v2225 = vrcp.pop %v2223
    %v2226 = vrcp.pop %v2224
    %v2227 = vmul.f32 %v2225, 1.0614054
    %v2228 = vmul.f32 %v2226, 1.0614054
    %v2229 = vadd.f32 %v2227, -1.4531521
    %v2230 = vadd.f32 %v2228, -1.4531521
    %v2231 = vmul.f32 %v2229, %v2225
    %v2232 = vmul.f32 %v2230, %v2226
    %v2233 = vadd.f32 %v2231, 1.4214138
    %v2234 = vadd.f32 %v2232, 1.4214138
    %v2235 = vmul.f32 %v2233, %v2225
    %v2236 = vmul.f32 %v2234, %v2226
    %v2237 = vadd.f32 %v2235, -0.28449672
    %v2238 = vadd.f32 %v2236, -0.28449672
    %v2239 = vmul.f32 %v2237, %v2225
    %v2240 = vmul.f32 %v2238, %v2226
    %v2241 = vadd.f32 %v2239, 0.2548296
    %v2242 = vadd.f32 %v2240, 0.2548296
    %v2243 = vmul.f32 %v2241, %v2225
    %v2244 = vmul.f32 %v2242, %v2226
    %v2245 = vsub.f32 0.0, %v2219
    %v2246 = vsub.f32 0.0, %v2220
    %v2247 = vmul.f32 %v2245, %v2219
    %v2248 = vmul.f32 %v2246, %v2220
    %v2249 = vmul.f32 %v2247, 1.442695
    %v2250 = vpow.pop %v2249
    %v2251 = vmul.f32 %v2248, 1.442695
    %v2252 = vpow.pop %v2251
    %v2253 = vmul.f32 %v2243, %v2250
    %v2254 = vmul.f32 %v2244, %v2252
    %v2255 = vsub.f32 1.0, %v2253
    %v2256 = vsub.f32 1.0, %v2254
    %vm2257 = vcmp.ge.f32.partialorder %v2217, 0.0
    %vm2258 = vcmp.ge.f32.partialorder %v2218, 0.0
    %v2259 = vsub.f32 0.0, %v2255
    %v2260 = vsub.f32 0.0, %v2256
    %v2261 = vsel %vm2257, %v2255, %v2259
    %v2262 = vsel %vm2258, %v2256, %v2260
    %v2263 = vadd.f32 %v2261, 1.0
    %v2264 = vadd.f32 %v2262, 1.0
    %v2265 = vmul.f32 %v2215, %v2263
    %v2266 = vmul.f32 %v2216, %v2264
    %v2267 = vlaneseq
    %v2268 = vshrl.u32 %v2267, 7
    %v2269 = vsub.s32 7, %v2268
    %v2270 = vrot.slane %v39, %v2269
    %v2272 = vsel %vm61, %v2265, 0
    %v2275 = vsel %vm61, %v2266, 0
    %2277 = vmatprep.subr.mxu0 0.0
    %2278 = vmatpush1.msra.mxu0 %v26
    %2279 = vmatprep.subr.mxu0 0.0
    %2280 = vmatpush1.msra.mxu0 %v30
    %2281 = vmatprep.subr.mxu0 0.0
    %2282 = vmatpush1.msra.mxu0 %v34
    %2283 = vmatprep.subr.mxu0 0.0
    %2284 = vmatpush1.msra.mxu0 %v38
    %2285 = vmatprep.subr.mxu0 0.0
    %2286 = vmatpush1.msra.mxu0 0.0
    %2287 = vmatprep.subr.mxu0 0.0
    %2288 = vmatpush1.msra.mxu0 0.0
    %2289 = vmatprep.subr.mxu0 0.0
    %2290 = vmatpush1.msra.mxu0 0.0
    %2291 = vmatprep.subr.mxu0 0.0
    %2292 = vmatpush1.msra.mxu0 0.0
    %2293 = vmatprep.subr.mxu0 0.0
    %2294 = vmatpush1.msra.mxu0 0.0
    %2295 = vmatprep.subr.mxu0 0.0
    %2296 = vmatpush1.msra.mxu0 0.0
    %2297 = vmatprep.subr.mxu0 0.0
    %2298 = vmatpush1.msra.mxu0 0.0
    %2299 = vmatprep.subr.mxu0 0.0
    %2300 = vmatpush1.msra.mxu0 0.0
    %2301 = vmatprep.subr.mxu0 0.0
    %2302 = vmatpush1.msra.mxu0 0.0
    %2303 = vmatprep.subr.mxu0 0.0
    %2304 = vmatpush1.msra.mxu0 0.0
    %2305 = vmatprep.subr.mxu0 0.0
    %2306 = vmatpush1.msra.mxu0 0.0
    %2307 = vmatprep.subr.mxu0 0.0
    %2308 = vmatpush1.msra.mxu0 0.0
    %2309 = vmatprep.subr.mxu0 0.0
    %2310 = vmatpush1.msra.mxu0 0.0
    %2311 = vmatprep.subr.mxu0 0.0
    %2312 = vmatpush1.msra.mxu0 0.0
    %2313 = vmatprep.subr.mxu0 0.0
    %2314 = vmatpush1.msra.mxu0 0.0
    %2315 = vmatprep.subr.mxu0 0.0
    %2316 = vmatpush1.msra.mxu0 0.0
    %2317 = vmatprep.subr.mxu0 0.0
    %2318 = vmatpush1.msra.mxu0 0.0
    %2319 = vmatprep.subr.mxu0 0.0
    %2320 = vmatpush1.msra.mxu0 0.0
    %2321 = vmatprep.subr.mxu0 0.0
    %2322 = vmatpush1.msra.mxu0 0.0
    %2323 = vmatprep.subr.mxu0 0.0
    %2324 = vmatpush1.msra.mxu0 0.0
    %2325 = vmatprep.subr.mxu0 0.0
    %2326 = vmatpush1.msra.mxu0 0.0
    %2327 = vmatprep.subr.mxu0 0.0
    %2328 = vmatpush1.msra.mxu0 0.0
    %2329 = vmatprep.subr.mxu0 0.0
    %2330 = vmatpush1.msra.mxu0 0.0
    %2331 = vmatprep.subr.mxu0 0.0
    %2332 = vmatpush1.msra.mxu0 0.0
    %2333 = vmatprep.subr.mxu0 0.0
    %2334 = vmatpush1.msra.mxu0 0.0
    %2335 = vmatprep.subr.mxu0 0.0
    %2336 = vmatpush1.msra.mxu0 0.0
    %2337 = vmatprep.subr.mxu0 0.0
    %2338 = vmatpush1.msra.mxu0 0.0
    %2339 = vmatprep.subr.mxu0 0.0
    %2340 = vmatpush1.msra.mxu0 0.0
    %2341 = vmatprep.mubr.f32.mxu0 0.0
    %2342 = vmatmul.mubr.f32.gmra.mrb[0].mxu0 %v2272
    %v2343 = vpop.f32.mrb[0].mxu0
    %v2344 = vadd.f32 %v2270, %v2343
    %v2345 = vpop.f32.mrb[0].mxu0
    %2346 = vmatprep.mubr.f32.mxu0 0.0
    %2347 = vmatmul.mubr.f32.gmra.mrb[0].mxu0 %v2275
    %v2348 = vpop.f32.mrb[0].mxu0
    %v2349 = vadd.f32 %v2270, %v2348
    %v2350 = vpop.f32.mrb[0].mxu0
    %2351 = vdwg.mxu0
    %v2352 = vadd.f32 %v1900, %v2344
    %v2353 = vadd.f32 %v1901, %v2349
    %v2354 = vadd.f32 %v2352, %v2110
    %v2355 = vadd.f32 %v2353, %v2115
    %v2356 = vsel %vm61, %v2354, 0.0
    %2357 = vadd.xlane.f32.xlu0 %v2356
    %v2358 = vpop.xlane.xlu0 %2357
    %v2359 = vsel %vm61, %v2355, 0.0
    %2360 = vadd.xlane.f32.xlu0 %v2359
    %v2361 = vpop.xlane.xlu0 %2360
    %v2362 = vmul.f32 %v2358, %v1869
    %v2363 = vmul.f32 %v2361, %v1869
    %v2364 = vsub.f32 %v2354, %v2362
    %v2365 = vsub.f32 %v2355, %v2363
    %v2366 = vmul.f32 %v2364, %v2364
    %v2367 = vmul.f32 %v2365, %v2365
    %v2368 = vsel %vm61, %v2366, 0.0
    %2369 = vadd.xlane.f32.xlu0 %v2368
    %v2370 = vpop.xlane.xlu0 %2369
    %v2371 = vsel %vm61, %v2367, 0.0
    %2372 = vadd.xlane.f32.xlu0 %v2371
    %v2373 = vpop.xlane.xlu0 %2372
    %v2374 = vmul.f32 %v2370, %v1869
    %v2375 = vmul.f32 %v2373, %v1869
    %v2376 = vadd.f32 %v2374, 1e-12
    %v2377 = vadd.f32 %v2375, 1e-12
    %v2378 = vrsqrt.pop %v2376
    %v2379 = vrsqrt.pop %v2377
    %v2380 = vmul.f32 %v2364, %v2378
    %v2381 = vmul.f32 %v2365, %v2379
    %v2382 = vlaneseq
    %v2383 = vshrl.u32 %v2382, 7
    %v2384 = vsub.s32 2, %v2383
    %v2385 = vrot.slane %v40, %v2384
    %v2386 = vmul.f32 %v2380, %v2385
    %v2387 = vmul.f32 %v2381, %v2385
    %v2388 = vlaneseq
    %v2389 = vshrl.u32 %v2388, 7
    %v2390 = vsub.s32 3, %v2389
    %v2391 = vrot.slane %v40, %v2390
    %v2392 = vadd.f32 %v2386, %v2391
    %v2393 = vadd.f32 %v2387, %v2391
    %2394 = vst.msk [vmem:[#allocation2] sm:$0xff] %vm61, %v2392
    %2395 = vst.msk [vmem:[#allocation2 + $0x8] sm:$0xff] %vm61, %v2393
    // Predicated region
    $region22: #{tpu_custom_call.1} parent=1 // pred_check
      _
    $region23: #{tpu_custom_call.1} parent=1 // pred_check_branch
      %2397 = sbr.rel (0) target = $region25
    $region24: #{tpu_custom_call.1} parent=1 // pred_region
      %s2399 = ssub.s32 256, 256
      %2400 = vsyncadd [#allocation3], %s2399
      %s2401 = sshll.u32 [#allocation2], 4
      %s2402 = int_to_ptr.vmem [resolvable:$true] %s2401
      %2407 = dma.vmem_to_hbm [thread:$0]  %s2402, 256, %s5, [#allocation3], 128, 128, 8
    $region25: #{tpu_custom_call.1} parent=1 // pred_fallthru
      _
    // Predicated region
    $region26: #{tpu_custom_call.1} parent=1 // pred_check
      _
    $region27: #{tpu_custom_call.1} parent=1 // pred_check_branch
      %2409 = sbr.rel (0) target = $region29
    $region28: #{tpu_custom_call.1} parent=1 // pred_region
      %2410 = dma.done [#allocation3], 256
    $region29: #{tpu_custom_call.1} parent=1 // pred_fallthru
      _
    %2411 = vsyncpa [#allocation3], 1

</llo_original>
